<compile_context>
chip_gen: v7x
topology: tpu7x:2x2x1
jax: 0.10.0
libtpu: 0.0.40
codegen_flags: <defaults>
</compile_context>

<pallas_src>
import functools
import math

import jax
import jax.numpy as jnp
from jax import lax
from jax.experimental import pallas as pl
from jax.experimental.pallas import tpu as pltpu

EPS = 1e-5                       # nn.LayerNorm default eps
COMPUTE_DTYPE = jnp.bfloat16     # MXU operand dtype (accumulation is f32)

# Contract last dim of x [M, Din] with last dim of w [Dout, Din] -> [M, Dout].
_DN_NT = (((1,), (1,)), ((), ()))


def _dot_nt(x, w):
    return lax.dot_general(x, w, _DN_NT, preferred_element_type=jnp.float32)


def _pick_tile(m, target):
    """Largest row-tile <= target that divides m (target is a multiple of 8)."""
    if m <= target:
        return m
    for t in range(target, 0, -8):
        if m % t == 0:
            return t
    return m


def _resident(shape):
    """BlockSpec for weights/biases resident in VMEM across the whole grid:
    constant block index + single buffering (no second buffer, no re-DMA)."""
    nd = len(shape)
    return pl.BlockSpec(shape, lambda *_: (0,) * nd,
                        pipeline_mode=pl.Buffered(1))


def _compiler_params(dims, block_bytes):
    """dimension_semantics + an explicit scoped-VMEM limit sized from the
    actual block footprint (with headroom), never below the 32 MiB default."""
    limit = int(min(max(2 * block_bytes + (4 << 20), 32 << 20), 112 << 20))
    return pltpu.CompilerParams(dimension_semantics=dims,
                                vmem_limit_bytes=limit)


# ----------------------------------------------------------------------------
# Pallas kernels
# ----------------------------------------------------------------------------
def _multi_proj_kernel(x_ref, *refs):
    """n fused linear projections of one input tile.

    refs = (w_0, b_0, ..., w_{n-1}, b_{n-1}, o_0, ..., o_{n-1})
    x: [tm, Din] f32; w_i: [Dout_i, Din] bf16; b_i: [1, Dout_i] f32.
    """
    n = len(refs) // 3
    x = x_ref[...].astype(COMPUTE_DTYPE)
    for i in range(n):
        w = refs[2 * i][...]
        b = refs[2 * i + 1][...]
        refs[2 * n + i][...] = _dot_nt(x, w) + b


def _add_ln_q_kernel(x_ref, y_ref, g_ref, bn_ref, wq_ref, bq_ref,
                     zn_ref, q_ref):
    """Fused: zn = LayerNorm(x + y); q = zn @ Wq^T + bq (torch-layout Wq)."""
    z = x_ref[...] + y_ref[...]
    mean = jnp.mean(z, axis=-1, keepdims=True)
    var = jnp.mean(jnp.square(z - mean), axis=-1, keepdims=True)
    zn = (z - mean) * lax.rsqrt(var + EPS) * g_ref[...] + bn_ref[...]
    zn_ref[...] = zn
    q_ref[...] = _dot_nt(zn.astype(COMPUTE_DTYPE), wq_ref[...]) + bq_ref[...]


def _flash_attn_kernel(q_ref, k_ref, v_ref, o_ref, m_sc, l_sc, acc_sc, *,
                       scale):
    """Online-softmax attention over Sk tiles; all heads of one batch/Sq-tile.

    q: [1, H, tq, Dh] f32; k/v: [1, H, tk, Dh] f32.  Scores & stats in f32,
    matmul operands bf16.  Output written only on the last Sk step.
    """
    ki = pl.program_id(2)

    @pl.when(ki == 0)
    def _():
        m_sc[...] = jnp.full_like(m_sc, -jnp.inf)
        l_sc[...] = jnp.zeros_like(l_sc)
        acc_sc[...] = jnp.zeros_like(acc_sc)

    q = (q_ref[0] * scale).astype(COMPUTE_DTYPE)   # fold scale into q (f32 mul)
    k = k_ref[0].astype(COMPUTE_DTYPE)
    v = v_ref[0].astype(COMPUTE_DTYPE)

    s = jnp.einsum("hqd,hkd->hqk", q, k, preferred_element_type=jnp.float32)
    m_prev = m_sc[...]
    m_new = jnp.maximum(m_prev, jnp.max(s, axis=-1, keepdims=True))
    alpha = jnp.exp(m_prev - m_new)
    p = jnp.exp(s - m_new)
    l_sc[...] = alpha * l_sc[...] + jnp.sum(p, axis=-1, keepdims=True)
    acc_sc[...] = alpha * acc_sc[...] + jnp.einsum(
        "hqk,hkd->hqd", p.astype(COMPUTE_DTYPE), v,
        preferred_element_type=jnp.float32)
    m_sc[...] = m_new

    @pl.when(ki == pl.num_programs(2) - 1)
    def _():
        # exact divide (not approx reciprocal) to stay close to torch softmax
        o_ref[0] = (acc_sc[...] / l_sc[...]).astype(o_ref.dtype)
        # TODO(synk): lane-dense ([tq, H*Dh]) store requires an in-kernel
        # relayout because of the quirky torch .view head mixing; left as the
        # (masked) Dh-lane store to avoid a Mosaic relayout on odd shapes.


def _erf(x):
    # Abramowitz & Stegun 7.1.26 (max abs err ~1.5e-7 ~ f32 eps); exact-GELU
    # within f32 tolerance of nn.GELU().  VALU filler under the MXU-bound MLP.
    a1, a2, a3, a4, a5 = (0.254829592, -0.284496736, 1.421413741,
                          -1.453152027, 1.061405429)
    p = 0.3275911
    ax = jnp.abs(x)
    t = 1.0 / (1.0 + p * ax)
    poly = ((((a5 * t + a4) * t + a3) * t + a2) * t + a1) * t
    y = 1.0 - poly * jnp.exp(-ax * ax)
    return jnp.where(x < 0, -y, y)


def _gelu_exact(x):
    return 0.5 * x * (1.0 + _erf(x * (1.0 / math.sqrt(2.0))))


def _add_ln_mlp_ln_kernel(a_ref, b_ref, g1_ref, bn1_ref, w1_ref, b1_ref,
                          w2_ref, b2_ref, g2_ref, bn2_ref, o_ref):
    """Fused: zn = LN1(a + b); out = LN2(Linear2(GELU(Linear1(zn))) + zn)."""
    z = a_ref[...] + b_ref[...]
    mean = jnp.mean(z, axis=-1, keepdims=True)
    var = jnp.mean(jnp.square(z - mean), axis=-1, keepdims=True)
    zn = (z - mean) * lax.rsqrt(var + EPS) * g1_ref[...] + bn1_ref[...]

    h = _gelu_exact(_dot_nt(zn.astype(COMPUTE_DTYPE), w1_ref[...]) + b1_ref[...])
    y = _dot_nt(h.astype(COMPUTE_DTYPE), w2_ref[...]) + b2_ref[...]

    r = y + zn                                     # residual (dropout_ff = id)
    mean2 = jnp.mean(r, axis=-1, keepdims=True)
    var2 = jnp.mean(jnp.square(r - mean2), axis=-1, keepdims=True)
    o_ref[...] = (r - mean2) * lax.rsqrt(var2 + EPS) * g2_ref[...] + bn2_ref[...]


# ----------------------------------------------------------------------------
# Wrappers (reshapes + pallas_call setup)
# ----------------------------------------------------------------------------
def multi_linear(x2d, weights, biases, tm_target=512):
    """Fused projections; x2d [M, Din] f32; weights[i] [Dout_i, Din] (torch)."""
    M, din = x2d.shape
    douts = [int(w.shape[0]) for w in weights]
    tm = _pick_tile(M, tm_target)

    in_specs = [pl.BlockSpec((tm, din), lambda i: (i, 0))]
    args = [x2d]
    wbytes = 0
    for w, b, dout in zip(weights, biases, douts):
        in_specs.append(_resident((dout, din)))
        in_specs.append(_resident((1, dout)))
        args += [w.astype(COMPUTE_DTYPE), b.reshape(1, dout)]
        wbytes += dout * din * 2 + dout * 4

    out_specs = tuple(pl.BlockSpec((tm, d), lambda i: (i, 0)) for d in douts)
    out_shape = tuple(jax.ShapeDtypeStruct((M, d), jnp.float32) for d in douts)
    blk = 2 * tm * din * 4 + wbytes + sum(2 * tm * d * 4 for d in douts)

    outs = pl.pallas_call(
        _multi_proj_kernel,
        grid=(M // tm,),
        in_specs=in_specs,
        out_specs=out_specs,
        out_shape=out_shape,
        compiler_params=_compiler_params(("parallel",), blk),
    )(*args)
    return tuple(outs)


def add_ln_q_proj(x, y, gamma, beta, wq, bq, tm_target=512):
    """Returns (LN(x+y) as [B,S,E], LN(x+y)@Wq^T+bq as [B*S,E]); x/y: [B,S,E]."""
    B, S, E = x.shape
    M = B * S
    tm = _pick_tile(M, tm_target)
    blk = 4 * tm * E * 4 + E * E * 2 + 3 * E * 4 + 4 * tm * E * 4

    zn, q = pl.pallas_call(
        _add_ln_q_kernel,
        grid=(M // tm,),
        in_specs=[
            pl.BlockSpec((tm, E), lambda i: (i, 0)),
            pl.BlockSpec((tm, E), lambda i: (i, 0)),
            _resident((1, E)),
            _resident((1, E)),
            _resident((E, E)),
            _resident((1, E)),
        ],
        out_specs=(pl.BlockSpec((tm, E), lambda i: (i, 0)),
                   pl.BlockSpec((tm, E), lambda i: (i, 0))),
        out_shape=(jax.ShapeDtypeStruct((M, E), jnp.float32),
                   jax.ShapeDtypeStruct((M, E), jnp.float32)),
        compiler_params=_compiler_params(("parallel",), blk),
    )(x.reshape(M, E), y.reshape(M, E), gamma.reshape(1, E), beta.reshape(1, E),
      wq.astype(COMPUTE_DTYPE), bq.reshape(1, E))
    return zn.reshape(B, S, E), q


def flash_attention(qh, kh, vh, scale, tq_target=256, tk_target=512):
    """qh: [B,H,Sq,Dh]; kh/vh: [B,H,Sk,Dh] -> [B,H,Sq,Dh] (f32).

    Grid (B, Sq_tiles, Sk_tiles); B/Sq parallel (megacore), Sk arbitrary with
    online-softmax accumulators in VMEM scratch.
    """
    B, H, Sq, Dh = qh.shape
    Sk = kh.shape[2]
    tq = _pick_tile(Sq, tq_target)
    tk = _pick_tile(Sk, tk_target)
    kernel = functools.partial(_flash_attn_kernel, scale=scale)
    blk = (2 * H * tq * Dh * 4 + 4 * H * tk * Dh * 4 + 2 * H * tq * Dh * 4
           + (H * tq * Dh + 2 * H * tq) * 4)

    return pl.pallas_call(
        kernel,
        grid=(B, Sq // tq, Sk // tk),
        in_specs=[
            pl.BlockSpec((1, H, tq, Dh), lambda b, qi, ki: (b, 0, qi, 0)),
            pl.BlockSpec((1, H, tk, Dh), lambda b, qi, ki: (b, 0, ki, 0)),
            pl.BlockSpec((1, H, tk, Dh), lambda b, qi, ki: (b, 0, ki, 0)),
        ],
        out_specs=pl.BlockSpec((1, H, tq, Dh), lambda b, qi, ki: (b, 0, qi, 0)),
        out_shape=jax.ShapeDtypeStruct((B, H, Sq, Dh), jnp.float32),
        scratch_shapes=[
            pltpu.VMEM((H, tq, 1), jnp.float32),    # running max m
            pltpu.VMEM((H, tq, 1), jnp.float32),    # running sum l
            pltpu.VMEM((H, tq, Dh), jnp.float32),   # output accumulator
        ],
        compiler_params=_compiler_params(("parallel", "parallel", "arbitrary"),
                                         blk),
    )(qh, kh, vh)


def add_ln_mlp_ln(a, b, p_mlp, ln1, ln2, tm_target=256):
    """LN2( Linear2(GELU(Linear1( LN1(a+b) ))) + LN1(a+b) ); a/b: [B,S,E].

    tm_target=256 keeps the [tm, F] hidden + single-buffered bf16 weights well
    inside v7x's 64 MiB; bump to 512 on v6e/v5e if desired.
    """
    B, S, E = a.shape
    F = int(p_mlp["W1"].shape[0])
    M = B * S
    tm = _pick_tile(M, tm_target)
    blk = (4 * tm * E * 4 + F * E * 2 + E * F * 2 + (F + 5 * E) * 4
           + tm * F * 4 + 2 * tm * E * 4)

    out = pl.pallas_call(
        _add_ln_mlp_ln_kernel,
        grid=(M // tm,),
        in_specs=[
            pl.BlockSpec((tm, E), lambda i: (i, 0)),
            pl.BlockSpec((tm, E), lambda i: (i, 0)),
            _resident((1, E)), _resident((1, E)),
            _resident((F, E)), _resident((1, F)),
            _resident((E, F)), _resident((1, E)),
            _resident((1, E)), _resident((1, E)),
        ],
        out_specs=pl.BlockSpec((tm, E), lambda i: (i, 0)),
        out_shape=jax.ShapeDtypeStruct((M, E), jnp.float32),
        compiler_params=_compiler_params(("parallel",), blk),
    )(a.reshape(M, E), b.reshape(M, E),
      ln1["g"].reshape(1, E), ln1["b"].reshape(1, E),
      p_mlp["W1"].astype(COMPUTE_DTYPE), p_mlp["b1"].reshape(1, F),
      p_mlp["W2"].astype(COMPUTE_DTYPE), p_mlp["b2"].reshape(1, E),
      ln2["g"].reshape(1, E), ln2["b"].reshape(1, E))
    return out.reshape(B, S, E)


# ----------------------------------------------------------------------------
# DecoderBlock forward (src_mask=None, tgt_mask=None path)
# ----------------------------------------------------------------------------
def decoder_block(src, tgt, params, heads):
    # TODO(synk): optional attention-mask path not implemented (the torch
    # mask.unsqueeze(1).repeat(...) path is shape-inconsistent as written).
    B, St, E = tgt.shape
    Ss = src.shape[1]
    Dh = E // heads

    # --- self attention on tgt: fused Q/K/V projections (tgt read once) ---
    p1 = params["add_mha"]
    qp, kp, vp = multi_linear(tgt.reshape(B * St, E),
                              [p1["Wq"], p1["Wk"], p1["Wv"]],
                              [p1["bq"], p1["bk"], p1["bv"]])
    # torch .view(b, heads, s, -1): raw row-major reshape (quirky but faithful)
    # torch scale = 1/sqrt(K.shape[-1]) where K was transposed -> 1/sqrt(s_k)
    self_out = flash_attention(qp.reshape(B, heads, St, Dh),
                               kp.reshape(B, heads, St, Dh),
                               vp.reshape(B, heads, St, Dh),
                               scale=1.0 / math.sqrt(float(St)))
    tgt_attended = self_out.reshape(B, St, E)      # raw reshape, free

    # --- fused: add + additional LayerNorm + cross-attention Q projection ---
    p2 = params["mha"]
    tgt_add_norm, q_cross = add_ln_q_proj(
        tgt_attended, tgt, params["add_ln"]["g"], params["add_ln"]["b"],
        p2["Wq"], p2["bq"])

    # --- cross attention: fused K/V projections over src ---
    kp2, vp2 = multi_linear(src.reshape(B * Ss, E),
                            [p2["Wk"], p2["Wv"]], [p2["bk"], p2["bv"]])
    cross_out = flash_attention(q_cross.reshape(B, heads, St, Dh),
                                kp2.reshape(B, heads, Ss, Dh),
                                vp2.reshape(B, heads, Ss, Dh),
                                scale=1.0 / math.sqrt(float(Ss)))
    cross_attended = cross_out.reshape(B, St, E)

    # --- fused: add + LayerNorm1 + MLP(GELU) + residual + LayerNorm2 ---
    return add_ln_mlp_ln(cross_attended, tgt_add_norm,
                         params["mlp"], params["ln1"], params["ln2"])


# ----------------------------------------------------------------------------
# Deterministic parameter init + demo
# ----------------------------------------------------------------------------
def init_params(key, E, F):
    ks = jax.random.split(key, 16)

    def mha_params(k0, k1, k2, k3, k4, k5):
        return dict(
            Wq=0.02 * jax.random.normal(k0, (E, E), jnp.float32),
            bq=0.02 * jax.random.normal(k1, (E,), jnp.float32),
            Wk=0.02 * jax.random.normal(k2, (E, E), jnp.float32),
            bk=0.02 * jax.random.normal(k3, (E,), jnp.float32),
            Wv=0.02 * jax.random.normal(k4, (E, E), jnp.float32),
            bv=0.02 * jax.random.normal(k5, (E,), jnp.float32),
        )

    return dict(
        add_mha=mha_params(*ks[0:6]),
        mha=mha_params(*ks[6:12]),
        add_ln=dict(g=jnp.ones((E,), jnp.float32),
                    b=jnp.zeros((E,), jnp.float32)),
        ln1=dict(g=jnp.ones((E,), jnp.float32),
                 b=jnp.zeros((E,), jnp.float32)),
        ln2=dict(g=jnp.ones((E,), jnp.float32),
                 b=jnp.zeros((E,), jnp.float32)),
        mlp=dict(
            W1=0.02 * jax.random.normal(ks[12], (F, E), jnp.float32),
            b1=0.02 * jax.random.normal(ks[13], (F,), jnp.float32),
            W2=0.02 * jax.random.normal(ks[14], (E, F), jnp.float32),
            b2=0.02 * jax.random.normal(ks[15], (E,), jnp.float32),
        ),
    )


if __name__ == "__main__":
    B, S_SRC, S_TGT, E, HEADS, FF = 2, 8, 8, 32, 2, 64

    key = jax.random.PRNGKey(0)
    k_src, k_tgt, k_par = jax.random.split(key, 3)
    src = jax.random.normal(k_src, (B, S_SRC, E), jnp.float32)
    tgt = jax.random.normal(k_tgt, (B, S_TGT, E), jnp.float32)
    params = init_params(k_par, E, FF)

    fwd = jax.jit(functools.partial(decoder_block, heads=HEADS))
    out = fwd(src, tgt, params)
    out = jax.block_until_ready(out)
    assert out.shape == (B, S_TGT, E), out.shape
    assert bool(jnp.all(jnp.isfinite(out)))
    print("KERNEL_OK")
</pallas_src>

<mosaic_0001>
module attributes {stable_mosaic.version = 11 : i64} {
  func.func @_flash_attn_kernel(%arg0: i32, %arg1: i32, %arg2: i32, %arg3: memref<1x2x8x16xf32, #tpu.memory_space<vmem>>, %arg4: memref<1x2x8x16xf32, #tpu.memory_space<vmem>>, %arg5: memref<1x2x8x16xf32, #tpu.memory_space<vmem>>, %arg6: memref<1x2x8x16xf32, #tpu.memory_space<vmem>>, %arg7: memref<2x8x1xf32, #tpu.memory_space<vmem>>, %arg8: memref<2x8x1xf32, #tpu.memory_space<vmem>>, %arg9: memref<2x8x16xf32, #tpu.memory_space<vmem>>) attributes {dimension_semantics = [#tpu.dimension_semantics<parallel>, #tpu.dimension_semantics<parallel>, #tpu.dimension_semantics<arbitrary>], iteration_bounds = array<i64: 2, 1, 1>, scalar_prefetch = 0 : i64, scratch_operands = 3 : i64, tpu.core_type = #tpu.core_type<tc>, window_params = [{transform_indices = @transform_0, window_bounds = array<i64: 1, 2, 8, 16>}, {transform_indices = @transform_1, window_bounds = array<i64: 1, 2, 8, 16>}, {transform_indices = @transform_2, window_bounds = array<i64: 1, 2, 8, 16>}, {transform_indices = @transform_3, window_bounds = array<i64: 1, 2, 8, 16>}]} {
    %c0_i32 = arith.constant 0 : i32
    %0 = arith.cmpi eq, %arg2, %c0_i32 : i32
    %1 = arith.extui %0 : i1 to i32
    %c0_i32_0 = arith.constant 0 : i32
    %2 = arith.cmpi ne, %1, %c0_i32_0 : i32
    scf.if %2 {
      %cst_36 = arith.constant 0xFF800000 : f32
      %41 = vector.broadcast %cst_36 : f32 to vector<2x8x1xf32>
      %c0_37 = arith.constant 0 : index
      %c0_38 = arith.constant 0 : index
      %c0_39 = arith.constant 0 : index
      %42 = vector.load %arg7[%c0_37, %c0_38, %c0_39] : memref<2x8x1xf32, #tpu.memory_space<vmem>>, vector<2x8x1xf32>
      tpu.vector_store %arg7[%c0_37, %c0_38, %c0_39], %41 {strides = array<i32>} : memref<2x8x1xf32, #tpu.memory_space<vmem>>, vector<2x8x1xf32>,
      %cst_40 = arith.constant 0.000000e+00 : f32
      %43 = vector.broadcast %cst_40 : f32 to vector<2x8x1xf32>
      %c0_41 = arith.constant 0 : index
      %c0_42 = arith.constant 0 : index
      %c0_43 = arith.constant 0 : index
      %44 = vector.load %arg8[%c0_41, %c0_42, %c0_43] : memref<2x8x1xf32, #tpu.memory_space<vmem>>, vector<2x8x1xf32>
      tpu.vector_store %arg8[%c0_41, %c0_42, %c0_43], %43 {strides = array<i32>} : memref<2x8x1xf32, #tpu.memory_space<vmem>>, vector<2x8x1xf32>,
      %cst_44 = arith.constant 0.000000e+00 : f32
      %45 = vector.broadcast %cst_44 : f32 to vector<2x8x16xf32>
      %c0_45 = arith.constant 0 : index
      %c0_46 = arith.constant 0 : index
      %c0_47 = arith.constant 0 : index
      %46 = vector.load %arg9[%c0_45, %c0_46, %c0_47] : memref<2x8x16xf32, #tpu.memory_space<vmem>>, vector<2x8x16xf32>
      tpu.vector_store %arg9[%c0_45, %c0_46, %c0_47], %45 {strides = array<i32>} : memref<2x8x16xf32, #tpu.memory_space<vmem>>, vector<2x8x16xf32>,
    } else {
    }
    %c0 = arith.constant 0 : index
    %c0_1 = arith.constant 0 : index
    %c0_2 = arith.constant 0 : index
    %c0_3 = arith.constant 0 : index
    %3 = vector.load %arg3[%c0, %c0_1, %c0_2, %c0_3] : memref<1x2x8x16xf32, #tpu.memory_space<vmem>>, vector<1x2x8x16xf32>
    %4 = vector.shape_cast %3 : vector<1x2x8x16xf32> to vector<2x8x16xf32>
    %cst = arith.constant 0.353553385 : f32
    %5 = vector.broadcast %cst : f32 to vector<2x8x16xf32>
    %6 = arith.mulf %4, %5 : vector<2x8x16xf32>
    %7 = arith.truncf %6 : vector<2x8x16xf32> to vector<2x8x16xbf16>
    %c0_4 = arith.constant 0 : index
    %c0_5 = arith.constant 0 : index
    %c0_6 = arith.constant 0 : index
    %c0_7 = arith.constant 0 : index
    %8 = vector.load %arg4[%c0_4, %c0_5, %c0_6, %c0_7] : memref<1x2x8x16xf32, #tpu.memory_space<vmem>>, vector<1x2x8x16xf32>
    %9 = vector.shape_cast %8 : vector<1x2x8x16xf32> to vector<2x8x16xf32>
    %10 = arith.truncf %9 : vector<2x8x16xf32> to vector<2x8x16xbf16>
    %c0_8 = arith.constant 0 : index
    %c0_9 = arith.constant 0 : index
    %c0_10 = arith.constant 0 : index
    %c0_11 = arith.constant 0 : index
    %11 = vector.load %arg5[%c0_8, %c0_9, %c0_10, %c0_11] : memref<1x2x8x16xf32, #tpu.memory_space<vmem>>, vector<1x2x8x16xf32>
    %12 = vector.shape_cast %11 : vector<1x2x8x16xf32> to vector<2x8x16xf32>
    %13 = arith.truncf %12 : vector<2x8x16xf32> to vector<2x8x16xbf16>
    "tpu.trace_start"() <{level = 10 : i32, message = "hqd,hkd->hqk"}> : () -> ()
    %cst_12 = arith.constant dense<0.000000e+00> : vector<2x8x8xf32>
    %14 = tpu.matmul %7, %10, %cst_12 {dimension_numbers = #tpu.dot_dimension_numbers<[2], [2], [1], [1], [0, 0, 0, 1, 1, 1], [0], [0]>} : vector<2x8x16xbf16>, vector<2x8x16xbf16>, vector<2x8x8xf32> -> vector<2x8x8xf32>
    "tpu.trace_stop"() : () -> ()
    %c0_13 = arith.constant 0 : index
    %c0_14 = arith.constant 0 : index
    %c0_15 = arith.constant 0 : index
    %15 = vector.load %arg7[%c0_13, %c0_14, %c0_15] : memref<2x8x1xf32, #tpu.memory_space<vmem>>, vector<2x8x1xf32>
    %cst_16 = arith.constant dense<0xFF800000> : vector<2x8xf32>
    %16 = vector.multi_reduction <maximumf>, %14, %cst_16 [2] : vector<2x8x8xf32> to vector<2x8xf32>
    %17 = vector.shape_cast %16 : vector<2x8xf32> to vector<2x8x1xf32>
    %18 = arith.maximumf %15, %17 : vector<2x8x1xf32>
    %19 = arith.subf %15, %18 : vector<2x8x1xf32>
    %20 = math.exp %19 : vector<2x8x1xf32>
    %21 = vector.broadcast %18 : vector<2x8x1xf32> to vector<2x8x8xf32>
    %22 = arith.subf %14, %21 : vector<2x8x8xf32>
    %23 = math.exp %22 : vector<2x8x8xf32>
    %c0_17 = arith.constant 0 : index
    %c0_18 = arith.constant 0 : index
    %c0_19 = arith.constant 0 : index
    %24 = vector.load %arg8[%c0_17, %c0_18, %c0_19] : memref<2x8x1xf32, #tpu.memory_space<vmem>>, vector<2x8x1xf32>
    %25 = arith.mulf %20, %24 : vector<2x8x1xf32>
    %cst_20 = arith.constant dense<0.000000e+00> : vector<2x8xf32>
    %26 = vector.multi_reduction <add>, %23, %cst_20 [2] : vector<2x8x8xf32> to vector<2x8xf32>
    %27 = vector.shape_cast %26 : vector<2x8xf32> to vector<2x8x1xf32>
    %28 = arith.addf %25, %27 : vector<2x8x1xf32>
    %c0_21 = arith.constant 0 : index
    %c0_22 = arith.constant 0 : index
    %c0_23 = arith.constant 0 : index
    %29 = vector.load %arg8[%c0_21, %c0_22, %c0_23] : memref<2x8x1xf32, #tpu.memory_space<vmem>>, vector<2x8x1xf32>
    tpu.vector_store %arg8[%c0_21, %c0_22, %c0_23], %28 {strides = array<i32>} : memref<2x8x1xf32, #tpu.memory_space<vmem>>, vector<2x8x1xf32>,
    %c0_24 = arith.constant 0 : index
    %c0_25 = arith.constant 0 : index
    %c0_26 = arith.constant 0 : index
    %30 = vector.load %arg9[%c0_24, %c0_25, %c0_26] : memref<2x8x16xf32, #tpu.memory_space<vmem>>, vector<2x8x16xf32>
    %31 = vector.broadcast %20 : vector<2x8x1xf32> to vector<2x8x16xf32>
    %32 = arith.mulf %31, %30 : vector<2x8x16xf32>
    %33 = arith.truncf %23 : vector<2x8x8xf32> to vector<2x8x8xbf16>
    "tpu.trace_start"() <{level = 10 : i32, message = "hqk,hkd->hqd"}> : () -> ()
    %cst_27 = arith.constant dense<0.000000e+00> : vector<2x8x16xf32>
    %34 = tpu.matmul %33, %13, %cst_27 {dimension_numbers = #tpu.dot_dimension_numbers<[2], [1], [1], [2], [0, 0, 0, 1, 1, 2], [0], [0]>} : vector<2x8x8xbf16>, vector<2x8x16xbf16>, vector<2x8x16xf32> -> vector<2x8x16xf32>
    "tpu.trace_stop"() : () -> ()
    %35 = arith.addf %32, %34 : vector<2x8x16xf32>
    %c0_28 = arith.constant 0 : index
    %c0_29 = arith.constant 0 : index
    %c0_30 = arith.constant 0 : index
    %36 = vector.load %arg9[%c0_28, %c0_29, %c0_30] : memref<2x8x16xf32, #tpu.memory_space<vmem>>, vector<2x8x16xf32>
    tpu.vector_store %arg9[%c0_28, %c0_29, %c0_30], %35 {strides = array<i32>} : memref<2x8x16xf32, #tpu.memory_space<vmem>>, vector<2x8x16xf32>,
    %c0_31 = arith.constant 0 : index
    %c0_32 = arith.constant 0 : index
    %c0_33 = arith.constant 0 : index
    %37 = vector.load %arg7[%c0_31, %c0_32, %c0_33] : memref<2x8x1xf32, #tpu.memory_space<vmem>>, vector<2x8x1xf32>
    tpu.vector_store %arg7[%c0_31, %c0_32, %c0_33], %18 {strides = array<i32>} : memref<2x8x1xf32, #tpu.memory_space<vmem>>, vector<2x8x1xf32>,
    %c0_i32_34 = arith.constant 0 : i32
    %38 = arith.cmpi eq, %arg2, %c0_i32_34 : i32
    %39 = arith.extui %38 : i1 to i32
    %c0_i32_35 = arith.constant 0 : i32
    %40 = arith.cmpi ne, %39, %c0_i32_35 : i32
    scf.if %40 {
      %c0_36 = arith.constant 0 : index
      %c0_37 = arith.constant 0 : index
      %c0_38 = arith.constant 0 : index
      %41 = vector.load %arg9[%c0_36, %c0_37, %c0_38] : memref<2x8x16xf32, #tpu.memory_space<vmem>>, vector<2x8x16xf32>
      %c0_39 = arith.constant 0 : index
      %c0_40 = arith.constant 0 : index
      %c0_41 = arith.constant 0 : index
      %42 = vector.load %arg8[%c0_39, %c0_40, %c0_41] : memref<2x8x1xf32, #tpu.memory_space<vmem>>, vector<2x8x1xf32>
      %43 = vector.broadcast %42 : vector<2x8x1xf32> to vector<2x8x16xf32>
      %44 = arith.divf %41, %43 : vector<2x8x16xf32>
      %c0_42 = arith.constant 0 : index
      %c0_43 = arith.constant 0 : index
      %c0_44 = arith.constant 0 : index
      %c0_45 = arith.constant 0 : index
      %45 = vector.load %arg6[%c0_42, %c0_43, %c0_44, %c0_45] : memref<1x2x8x16xf32, #tpu.memory_space<vmem>>, vector<1x2x8x16xf32>
      %46 = vector.shape_cast %45 : vector<1x2x8x16xf32> to vector<2x8x16xf32>
      %47 = vector.shape_cast %44 : vector<2x8x16xf32> to vector<1x2x8x16xf32>
      tpu.vector_store %arg6[%c0_42, %c0_43, %c0_44, %c0_45], %47 {strides = array<i32>} : memref<1x2x8x16xf32, #tpu.memory_space<vmem>>, vector<1x2x8x16xf32>,
    } else {
    }
    return
  }
  func.func @transform_0(%arg0: i32, %arg1: i32, %arg2: i32) -> (i32, i32, i32, i32) {
    %c0_i32 = arith.constant 0 : i32
    %c0_i32_0 = arith.constant 0 : i32
    %c0_i32_1 = arith.constant 0 : i32
    return %arg0, %c0_i32, %arg1, %c0_i32_0 : i32, i32, i32, i32
  }
  func.func @transform_1(%arg0: i32, %arg1: i32, %arg2: i32) -> (i32, i32, i32, i32) {
    %c0_i32 = arith.constant 0 : i32
    %c0_i32_0 = arith.constant 0 : i32
    %c0_i32_1 = arith.constant 0 : i32
    return %arg0, %c0_i32, %arg2, %c0_i32_0 : i32, i32, i32, i32
  }
  func.func @transform_2(%arg0: i32, %arg1: i32, %arg2: i32) -> (i32, i32, i32, i32) {
    %c0_i32 = arith.constant 0 : i32
    %c0_i32_0 = arith.constant 0 : i32
    %c0_i32_1 = arith.constant 0 : i32
    return %arg0, %c0_i32, %arg2, %c0_i32_0 : i32, i32, i32, i32
  }
  func.func @transform_3(%arg0: i32, %arg1: i32, %arg2: i32) -> (i32, i32, i32, i32) {
    %c0_i32 = arith.constant 0 : i32
    %c0_i32_0 = arith.constant 0 : i32
    %c0_i32_1 = arith.constant 0 : i32
    return %arg0, %c0_i32, %arg1, %c0_i32_0 : i32, i32, i32, i32
  }
}

module attributes {stable_mosaic.version = 11 : i64} {
  func.func @_multi_proj_kernel(%arg0: i32, %arg1: memref<16x32xf32, #tpu.memory_space<vmem>>, %arg2: memref<32x32xbf16, #tpu.memory_space<vmem>>, %arg3: memref<1x32xf32, #tpu.memory_space<vmem>>, %arg4: memref<32x32xbf16, #tpu.memory_space<vmem>>, %arg5: memref<1x32xf32, #tpu.memory_space<vmem>>, %arg6: memref<32x32xbf16, #tpu.memory_space<vmem>>, %arg7: memref<1x32xf32, #tpu.memory_space<vmem>>, %arg8: memref<16x32xf32, #tpu.memory_space<vmem>>, %arg9: memref<16x32xf32, #tpu.memory_space<vmem>>, %arg10: memref<16x32xf32, #tpu.memory_space<vmem>>) attributes {dimension_semantics = [#tpu.dimension_semantics<parallel>], iteration_bounds = array<i64: 1>, scalar_prefetch = 0 : i64, scratch_operands = 0 : i64, tpu.core_type = #tpu.core_type<tc>, window_params = [{transform_indices = @transform_0, window_bounds = array<i64: 16, 32>}, {pipeline_mode = #tpu.pipeline_mode<synchronous>, transform_indices = @transform_1, window_bounds = array<i64: 32, 32>}, {pipeline_mode = #tpu.pipeline_mode<synchronous>, transform_indices = @transform_2, window_bounds = array<i64: 1, 32>}, {pipeline_mode = #tpu.pipeline_mode<synchronous>, transform_indices = @transform_3, window_bounds = array<i64: 32, 32>}, {pipeline_mode = #tpu.pipeline_mode<synchronous>, transform_indices = @transform_4, window_bounds = array<i64: 1, 32>}, {pipeline_mode = #tpu.pipeline_mode<synchronous>, transform_indices = @transform_5, window_bounds = array<i64: 32, 32>}, {pipeline_mode = #tpu.pipeline_mode<synchronous>, transform_indices = @transform_6, window_bounds = array<i64: 1, 32>}, {transform_indices = @transform_7, window_bounds = array<i64: 16, 32>}, {transform_indices = @transform_8, window_bounds = array<i64: 16, 32>}, {transform_indices = @transform_9, window_bounds = array<i64: 16, 32>}]} {
    %c0 = arith.constant 0 : index
    %c0_0 = arith.constant 0 : index
    %0 = vector.load %arg1[%c0, %c0_0] : memref<16x32xf32, #tpu.memory_space<vmem>>, vector<16x32xf32>
    %1 = arith.truncf %0 : vector<16x32xf32> to vector<16x32xbf16>
    %c0_1 = arith.constant 0 : index
    %c0_2 = arith.constant 0 : index
    %2 = vector.load %arg2[%c0_1, %c0_2] : memref<32x32xbf16, #tpu.memory_space<vmem>>, vector<32x32xbf16>
    %c0_3 = arith.constant 0 : index
    %c0_4 = arith.constant 0 : index
    %3 = vector.load %arg3[%c0_3, %c0_4] : memref<1x32xf32, #tpu.memory_space<vmem>>, vector<1x32xf32>
    %cst = arith.constant dense<0.000000e+00> : vector<16x32xf32>
    %4 = tpu.matmul %1, %2, %cst {dimension_numbers = #tpu.dot_dimension_numbers<[1], [1], [0], [0], [0, 0, 1, 0], [], []>} : vector<16x32xbf16>, vector<32x32xbf16>, vector<16x32xf32> -> vector<16x32xf32>
    %5 = vector.broadcast %3 : vector<1x32xf32> to vector<16x32xf32>
    %6 = arith.addf %4, %5 : vector<16x32xf32>
    %c0_5 = arith.constant 0 : index
    %c0_6 = arith.constant 0 : index
    %7 = vector.load %arg8[%c0_5, %c0_6] : memref<16x32xf32, #tpu.memory_space<vmem>>, vector<16x32xf32>
    tpu.vector_store %arg8[%c0_5, %c0_6], %6 {strides = array<i32>} : memref<16x32xf32, #tpu.memory_space<vmem>>, vector<16x32xf32>,
    %c0_7 = arith.constant 0 : index
    %c0_8 = arith.constant 0 : index
    %8 = vector.load %arg4[%c0_7, %c0_8] : memref<32x32xbf16, #tpu.memory_space<vmem>>, vector<32x32xbf16>
    %c0_9 = arith.constant 0 : index
    %c0_10 = arith.constant 0 : index
    %9 = vector.load %arg5[%c0_9, %c0_10] : memref<1x32xf32, #tpu.memory_space<vmem>>, vector<1x32xf32>
    %cst_11 = arith.constant dense<0.000000e+00> : vector<16x32xf32>
    %10 = tpu.matmul %1, %8, %cst_11 {dimension_numbers = #tpu.dot_dimension_numbers<[1], [1], [0], [0], [0, 0, 1, 0], [], []>} : vector<16x32xbf16>, vector<32x32xbf16>, vector<16x32xf32> -> vector<16x32xf32>
    %11 = vector.broadcast %9 : vector<1x32xf32> to vector<16x32xf32>
    %12 = arith.addf %10, %11 : vector<16x32xf32>
    %c0_12 = arith.constant 0 : index
    %c0_13 = arith.constant 0 : index
    %13 = vector.load %arg9[%c0_12, %c0_13] : memref<16x32xf32, #tpu.memory_space<vmem>>, vector<16x32xf32>
    tpu.vector_store %arg9[%c0_12, %c0_13], %12 {strides = array<i32>} : memref<16x32xf32, #tpu.memory_space<vmem>>, vector<16x32xf32>,
    %c0_14 = arith.constant 0 : index
    %c0_15 = arith.constant 0 : index
    %14 = vector.load %arg6[%c0_14, %c0_15] : memref<32x32xbf16, #tpu.memory_space<vmem>>, vector<32x32xbf16>
    %c0_16 = arith.constant 0 : index
    %c0_17 = arith.constant 0 : index
    %15 = vector.load %arg7[%c0_16, %c0_17] : memref<1x32xf32, #tpu.memory_space<vmem>>, vector<1x32xf32>
    %cst_18 = arith.constant dense<0.000000e+00> : vector<16x32xf32>
    %16 = tpu.matmul %1, %14, %cst_18 {dimension_numbers = #tpu.dot_dimension_numbers<[1], [1], [0], [0], [0, 0, 1, 0], [], []>} : vector<16x32xbf16>, vector<32x32xbf16>, vector<16x32xf32> -> vector<16x32xf32>
    %17 = vector.broadcast %15 : vector<1x32xf32> to vector<16x32xf32>
    %18 = arith.addf %16, %17 : vector<16x32xf32>
    %c0_19 = arith.constant 0 : index
    %c0_20 = arith.constant 0 : index
    %19 = vector.load %arg10[%c0_19, %c0_20] : memref<16x32xf32, #tpu.memory_space<vmem>>, vector<16x32xf32>
    tpu.vector_store %arg10[%c0_19, %c0_20], %18 {strides = array<i32>} : memref<16x32xf32, #tpu.memory_space<vmem>>, vector<16x32xf32>,
    return
  }
  func.func @transform_0(%arg0: i32) -> (i32, i32) {
    %c0_i32 = arith.constant 0 : i32
    %c0_i32_0 = arith.constant 0 : i32
    return %arg0, %c0_i32 : i32, i32
  }
  func.func @transform_1(%arg0: i32) -> (i32, i32) {
    %c0_i32 = arith.constant 0 : i32
    %c0_i32_0 = arith.constant 0 : i32
    %c0_i32_1 = arith.constant 0 : i32
    return %c0_i32, %c0_i32_0 : i32, i32
  }
  func.func @transform_2(%arg0: i32) -> (i32, i32) {
    %c0_i32 = arith.constant 0 : i32
    %c0_i32_0 = arith.constant 0 : i32
    %c0_i32_1 = arith.constant 0 : i32
    return %c0_i32, %c0_i32_0 : i32, i32
  }
  func.func @transform_3(%arg0: i32) -> (i32, i32) {
    %c0_i32 = arith.constant 0 : i32
    %c0_i32_0 = arith.constant 0 : i32
    %c0_i32_1 = arith.constant 0 : i32
    return %c0_i32, %c0_i32_0 : i32, i32
  }
  func.func @transform_4(%arg0: i32) -> (i32, i32) {
    %c0_i32 = arith.constant 0 : i32
    %c0_i32_0 = arith.constant 0 : i32
    %c0_i32_1 = arith.constant 0 : i32
    return %c0_i32, %c0_i32_0 : i32, i32
  }
  func.func @transform_5(%arg0: i32) -> (i32, i32) {
    %c0_i32 = arith.constant 0 : i32
    %c0_i32_0 = arith.constant 0 : i32
    %c0_i32_1 = arith.constant 0 : i32
    return %c0_i32, %c0_i32_0 : i32, i32
  }
  func.func @transform_6(%arg0: i32) -> (i32, i32) {
    %c0_i32 = arith.constant 0 : i32
    %c0_i32_0 = arith.constant 0 : i32
    %c0_i32_1 = arith.constant 0 : i32
    return %c0_i32, %c0_i32_0 : i32, i32
  }
  func.func @transform_7(%arg0: i32) -> (i32, i32) {
    %c0_i32 = arith.constant 0 : i32
    %c0_i32_0 = arith.constant 0 : i32
    return %arg0, %c0_i32 : i32, i32
  }
  func.func @transform_8(%arg0: i32) -> (i32, i32) {
    %c0_i32 = arith.constant 0 : i32
    %c0_i32_0 = arith.constant 0 : i32
    return %arg0, %c0_i32 : i32, i32
  }
  func.func @transform_9(%arg0: i32) -> (i32, i32) {
    %c0_i32 = arith.constant 0 : i32
    %c0_i32_0 = arith.constant 0 : i32
    return %arg0, %c0_i32 : i32, i32
  }
}

module attributes {stable_mosaic.version = 11 : i64} {
  func.func @_add_ln_q_kernel(%arg0: i32, %arg1: memref<16x32xf32, #tpu.memory_space<vmem>>, %arg2: memref<16x32xf32, #tpu.memory_space<vmem>>, %arg3: memref<1x32xf32, #tpu.memory_space<vmem>>, %arg4: memref<1x32xf32, #tpu.memory_space<vmem>>, %arg5: memref<32x32xbf16, #tpu.memory_space<vmem>>, %arg6: memref<1x32xf32, #tpu.memory_space<vmem>>, %arg7: memref<16x32xf32, #tpu.memory_space<vmem>>, %arg8: memref<16x32xf32, #tpu.memory_space<vmem>>) attributes {dimension_semantics = [#tpu.dimension_semantics<parallel>], iteration_bounds = array<i64: 1>, scalar_prefetch = 0 : i64, scratch_operands = 0 : i64, tpu.core_type = #tpu.core_type<tc>, window_params = [{transform_indices = @transform_0, window_bounds = array<i64: 16, 32>}, {transform_indices = @transform_1, window_bounds = array<i64: 16, 32>}, {pipeline_mode = #tpu.pipeline_mode<synchronous>, transform_indices = @transform_2, window_bounds = array<i64: 1, 32>}, {pipeline_mode = #tpu.pipeline_mode<synchronous>, transform_indices = @transform_3, window_bounds = array<i64: 1, 32>}, {pipeline_mode = #tpu.pipeline_mode<synchronous>, transform_indices = @transform_4, window_bounds = array<i64: 32, 32>}, {pipeline_mode = #tpu.pipeline_mode<synchronous>, transform_indices = @transform_5, window_bounds = array<i64: 1, 32>}, {transform_indices = @transform_6, window_bounds = array<i64: 16, 32>}, {transform_indices = @transform_7, window_bounds = array<i64: 16, 32>}]} {
    %c0 = arith.constant 0 : index
    %c0_0 = arith.constant 0 : index
    %0 = vector.load %arg1[%c0, %c0_0] : memref<16x32xf32, #tpu.memory_space<vmem>>, vector<16x32xf32>
    %c0_1 = arith.constant 0 : index
    %c0_2 = arith.constant 0 : index
    %1 = vector.load %arg2[%c0_1, %c0_2] : memref<16x32xf32, #tpu.memory_space<vmem>>, vector<16x32xf32>
    %2 = arith.addf %0, %1 : vector<16x32xf32>
    %cst = arith.constant dense<0.000000e+00> : vector<16xf32>
    %3 = vector.multi_reduction <add>, %2, %cst [1] : vector<16x32xf32> to vector<16xf32>
    %4 = vector.shape_cast %3 : vector<16xf32> to vector<16x1xf32>
    %cst_3 = arith.constant 3.200000e+01 : f32
    %5 = vector.broadcast %cst_3 : f32 to vector<16x1xf32>
    %6 = arith.divf %4, %5 : vector<16x1xf32>
    %7 = vector.broadcast %6 : vector<16x1xf32> to vector<16x32xf32>
    %8 = arith.subf %2, %7 : vector<16x32xf32>
    %9 = arith.mulf %8, %8 : vector<16x32xf32>
    %cst_4 = arith.constant dense<0.000000e+00> : vector<16xf32>
    %10 = vector.multi_reduction <add>, %9, %cst_4 [1] : vector<16x32xf32> to vector<16xf32>
    %11 = vector.shape_cast %10 : vector<16xf32> to vector<16x1xf32>
    %cst_5 = arith.constant 3.200000e+01 : f32
    %12 = vector.broadcast %cst_5 : f32 to vector<16x1xf32>
    %13 = arith.divf %11, %12 : vector<16x1xf32>
    %14 = vector.broadcast %6 : vector<16x1xf32> to vector<16x32xf32>
    %15 = arith.subf %2, %14 : vector<16x32xf32>
    %cst_6 = arith.constant 9.99999974E-6 : f32
    %16 = vector.broadcast %cst_6 : f32 to vector<16x1xf32>
    %17 = arith.addf %13, %16 : vector<16x1xf32>
    %18 = math.rsqrt %17 : vector<16x1xf32>
    %19 = vector.broadcast %18 : vector<16x1xf32> to vector<16x32xf32>
    %20 = arith.mulf %15, %19 : vector<16x32xf32>
    %c0_7 = arith.constant 0 : index
    %c0_8 = arith.constant 0 : index
    %21 = vector.load %arg3[%c0_7, %c0_8] : memref<1x32xf32, #tpu.memory_space<vmem>>, vector<1x32xf32>
    %22 = vector.broadcast %21 : vector<1x32xf32> to vector<16x32xf32>
    %23 = arith.mulf %20, %22 : vector<16x32xf32>
    %c0_9 = arith.constant 0 : index
    %c0_10 = arith.constant 0 : index
    %24 = vector.load %arg4[%c0_9, %c0_10] : memref<1x32xf32, #tpu.memory_space<vmem>>, vector<1x32xf32>
    %25 = vector.broadcast %24 : vector<1x32xf32> to vector<16x32xf32>
    %26 = arith.addf %23, %25 : vector<16x32xf32>
    %c0_11 = arith.constant 0 : index
    %c0_12 = arith.constant 0 : index
    %27 = vector.load %arg7[%c0_11, %c0_12] : memref<16x32xf32, #tpu.memory_space<vmem>>, vector<16x32xf32>
    tpu.vector_store %arg7[%c0_11, %c0_12], %26 {strides = array<i32>} : memref<16x32xf32, #tpu.memory_space<vmem>>, vector<16x32xf32>,
    %28 = arith.truncf %26 : vector<16x32xf32> to vector<16x32xbf16>
    %c0_13 = arith.constant 0 : index
    %c0_14 = arith.constant 0 : index
    %29 = vector.load %arg5[%c0_13, %c0_14] : memref<32x32xbf16, #tpu.memory_space<vmem>>, vector<32x32xbf16>
    %cst_15 = arith.constant dense<0.000000e+00> : vector<16x32xf32>
    %30 = tpu.matmul %28, %29, %cst_15 {dimension_numbers = #tpu.dot_dimension_numbers<[1], [1], [0], [0], [0, 0, 1, 0], [], []>} : vector<16x32xbf16>, vector<32x32xbf16>, vector<16x32xf32> -> vector<16x32xf32>
    %c0_16 = arith.constant 0 : index
    %c0_17 = arith.constant 0 : index
    %31 = vector.load %arg6[%c0_16, %c0_17] : memref<1x32xf32, #tpu.memory_space<vmem>>, vector<1x32xf32>
    %32 = vector.broadcast %31 : vector<1x32xf32> to vector<16x32xf32>
    %33 = arith.addf %30, %32 : vector<16x32xf32>
    %c0_18 = arith.constant 0 : index
    %c0_19 = arith.constant 0 : index
    %34 = vector.load %arg8[%c0_18, %c0_19] : memref<16x32xf32, #tpu.memory_space<vmem>>, vector<16x32xf32>
    tpu.vector_store %arg8[%c0_18, %c0_19], %33 {strides = array<i32>} : memref<16x32xf32, #tpu.memory_space<vmem>>, vector<16x32xf32>,
    return
  }
  func.func @transform_0(%arg0: i32) -> (i32, i32) {
    %c0_i32 = arith.constant 0 : i32
    %c0_i32_0 = arith.constant 0 : i32
    return %arg0, %c0_i32 : i32, i32
  }
  func.func @transform_1(%arg0: i32) -> (i32, i32) {
    %c0_i32 = arith.constant 0 : i32
    %c0_i32_0 = arith.constant 0 : i32
    return %arg0, %c0_i32 : i32, i32
  }
  func.func @transform_2(%arg0: i32) -> (i32, i32) {
    %c0_i32 = arith.constant 0 : i32
    %c0_i32_0 = arith.constant 0 : i32
    %c0_i32_1 = arith.constant 0 : i32
    return %c0_i32, %c0_i32_0 : i32, i32
  }
  func.func @transform_3(%arg0: i32) -> (i32, i32) {
    %c0_i32 = arith.constant 0 : i32
    %c0_i32_0 = arith.constant 0 : i32
    %c0_i32_1 = arith.constant 0 : i32
    return %c0_i32, %c0_i32_0 : i32, i32
  }
  func.func @transform_4(%arg0: i32) -> (i32, i32) {
    %c0_i32 = arith.constant 0 : i32
    %c0_i32_0 = arith.constant 0 : i32
    %c0_i32_1 = arith.constant 0 : i32
    return %c0_i32, %c0_i32_0 : i32, i32
  }
  func.func @transform_5(%arg0: i32) -> (i32, i32) {
    %c0_i32 = arith.constant 0 : i32
    %c0_i32_0 = arith.constant 0 : i32
    %c0_i32_1 = arith.constant 0 : i32
    return %c0_i32, %c0_i32_0 : i32, i32
  }
  func.func @transform_6(%arg0: i32) -> (i32, i32) {
    %c0_i32 = arith.constant 0 : i32
    %c0_i32_0 = arith.constant 0 : i32
    return %arg0, %c0_i32 : i32, i32
  }
  func.func @transform_7(%arg0: i32) -> (i32, i32) {
    %c0_i32 = arith.constant 0 : i32
    %c0_i32_0 = arith.constant 0 : i32
    return %arg0, %c0_i32 : i32, i32
  }
}

module attributes {stable_mosaic.version = 11 : i64} {
  func.func @_multi_proj_kernel(%arg0: i32, %arg1: memref<16x32xf32, #tpu.memory_space<vmem>>, %arg2: memref<32x32xbf16, #tpu.memory_space<vmem>>, %arg3: memref<1x32xf32, #tpu.memory_space<vmem>>, %arg4: memref<32x32xbf16, #tpu.memory_space<vmem>>, %arg5: memref<1x32xf32, #tpu.memory_space<vmem>>, %arg6: memref<16x32xf32, #tpu.memory_space<vmem>>, %arg7: memref<16x32xf32, #tpu.memory_space<vmem>>) attributes {dimension_semantics = [#tpu.dimension_semantics<parallel>], iteration_bounds = array<i64: 1>, scalar_prefetch = 0 : i64, scratch_operands = 0 : i64, tpu.core_type = #tpu.core_type<tc>, window_params = [{transform_indices = @transform_0, window_bounds = array<i64: 16, 32>}, {pipeline_mode = #tpu.pipeline_mode<synchronous>, transform_indices = @transform_1, window_bounds = array<i64: 32, 32>}, {pipeline_mode = #tpu.pipeline_mode<synchronous>, transform_indices = @transform_2, window_bounds = array<i64: 1, 32>}, {pipeline_mode = #tpu.pipeline_mode<synchronous>, transform_indices = @transform_3, window_bounds = array<i64: 32, 32>}, {pipeline_mode = #tpu.pipeline_mode<synchronous>, transform_indices = @transform_4, window_bounds = array<i64: 1, 32>}, {transform_indices = @transform_5, window_bounds = array<i64: 16, 32>}, {transform_indices = @transform_6, window_bounds = array<i64: 16, 32>}]} {
    %c0 = arith.constant 0 : index
    %c0_0 = arith.constant 0 : index
    %0 = vector.load %arg1[%c0, %c0_0] : memref<16x32xf32, #tpu.memory_space<vmem>>, vector<16x32xf32>
    %1 = arith.truncf %0 : vector<16x32xf32> to vector<16x32xbf16>
    %c0_1 = arith.constant 0 : index
    %c0_2 = arith.constant 0 : index
    %2 = vector.load %arg2[%c0_1, %c0_2] : memref<32x32xbf16, #tpu.memory_space<vmem>>, vector<32x32xbf16>
    %c0_3 = arith.constant 0 : index
    %c0_4 = arith.constant 0 : index
    %3 = vector.load %arg3[%c0_3, %c0_4] : memref<1x32xf32, #tpu.memory_space<vmem>>, vector<1x32xf32>
    %cst = arith.constant dense<0.000000e+00> : vector<16x32xf32>
    %4 = tpu.matmul %1, %2, %cst {dimension_numbers = #tpu.dot_dimension_numbers<[1], [1], [0], [0], [0, 0, 1, 0], [], []>} : vector<16x32xbf16>, vector<32x32xbf16>, vector<16x32xf32> -> vector<16x32xf32>
    %5 = vector.broadcast %3 : vector<1x32xf32> to vector<16x32xf32>
    %6 = arith.addf %4, %5 : vector<16x32xf32>
    %c0_5 = arith.constant 0 : index
    %c0_6 = arith.constant 0 : index
    %7 = vector.load %arg6[%c0_5, %c0_6] : memref<16x32xf32, #tpu.memory_space<vmem>>, vector<16x32xf32>
    tpu.vector_store %arg6[%c0_5, %c0_6], %6 {strides = array<i32>} : memref<16x32xf32, #tpu.memory_space<vmem>>, vector<16x32xf32>,
    %c0_7 = arith.constant 0 : index
    %c0_8 = arith.constant 0 : index
    %8 = vector.load %arg4[%c0_7, %c0_8] : memref<32x32xbf16, #tpu.memory_space<vmem>>, vector<32x32xbf16>
    %c0_9 = arith.constant 0 : index
    %c0_10 = arith.constant 0 : index
    %9 = vector.load %arg5[%c0_9, %c0_10] : memref<1x32xf32, #tpu.memory_space<vmem>>, vector<1x32xf32>
    %cst_11 = arith.constant dense<0.000000e+00> : vector<16x32xf32>
    %10 = tpu.matmul %1, %8, %cst_11 {dimension_numbers = #tpu.dot_dimension_numbers<[1], [1], [0], [0], [0, 0, 1, 0], [], []>} : vector<16x32xbf16>, vector<32x32xbf16>, vector<16x32xf32> -> vector<16x32xf32>
    %11 = vector.broadcast %9 : vector<1x32xf32> to vector<16x32xf32>
    %12 = arith.addf %10, %11 : vector<16x32xf32>
    %c0_12 = arith.constant 0 : index
    %c0_13 = arith.constant 0 : index
    %13 = vector.load %arg7[%c0_12, %c0_13] : memref<16x32xf32, #tpu.memory_space<vmem>>, vector<16x32xf32>
    tpu.vector_store %arg7[%c0_12, %c0_13], %12 {strides = array<i32>} : memref<16x32xf32, #tpu.memory_space<vmem>>, vector<16x32xf32>,
    return
  }
  func.func @transform_0(%arg0: i32) -> (i32, i32) {
    %c0_i32 = arith.constant 0 : i32
    %c0_i32_0 = arith.constant 0 : i32
    return %arg0, %c0_i32 : i32, i32
  }
  func.func @transform_1(%arg0: i32) -> (i32, i32) {
    %c0_i32 = arith.constant 0 : i32
    %c0_i32_0 = arith.constant 0 : i32
    %c0_i32_1 = arith.constant 0 : i32
    return %c0_i32, %c0_i32_0 : i32, i32
  }
  func.func @transform_2(%arg0: i32) -> (i32, i32) {
    %c0_i32 = arith.constant 0 : i32
    %c0_i32_0 = arith.constant 0 : i32
    %c0_i32_1 = arith.constant 0 : i32
    return %c0_i32, %c0_i32_0 : i32, i32
  }
  func.func @transform_3(%arg0: i32) -> (i32, i32) {
    %c0_i32 = arith.constant 0 : i32
    %c0_i32_0 = arith.constant 0 : i32
    %c0_i32_1 = arith.constant 0 : i32
    return %c0_i32, %c0_i32_0 : i32, i32
  }
  func.func @transform_4(%arg0: i32) -> (i32, i32) {
    %c0_i32 = arith.constant 0 : i32
    %c0_i32_0 = arith.constant 0 : i32
    %c0_i32_1 = arith.constant 0 : i32
    return %c0_i32, %c0_i32_0 : i32, i32
  }
  func.func @transform_5(%arg0: i32) -> (i32, i32) {
    %c0_i32 = arith.constant 0 : i32
    %c0_i32_0 = arith.constant 0 : i32
    return %arg0, %c0_i32 : i32, i32
  }
  func.func @transform_6(%arg0: i32) -> (i32, i32) {
    %c0_i32 = arith.constant 0 : i32
    %c0_i32_0 = arith.constant 0 : i32
    return %arg0, %c0_i32 : i32, i32
  }
}

module attributes {stable_mosaic.version = 11 : i64} {
  func.func @_add_ln_mlp_ln_kernel(%arg0: i32, %arg1: memref<16x32xf32, #tpu.memory_space<vmem>>, %arg2: memref<16x32xf32, #tpu.memory_space<vmem>>, %arg3: memref<1x32xf32, #tpu.memory_space<vmem>>, %arg4: memref<1x32xf32, #tpu.memory_space<vmem>>, %arg5: memref<64x32xbf16, #tpu.memory_space<vmem>>, %arg6: memref<1x64xf32, #tpu.memory_space<vmem>>, %arg7: memref<32x64xbf16, #tpu.memory_space<vmem>>, %arg8: memref<1x32xf32, #tpu.memory_space<vmem>>, %arg9: memref<1x32xf32, #tpu.memory_space<vmem>>, %arg10: memref<1x32xf32, #tpu.memory_space<vmem>>, %arg11: memref<16x32xf32, #tpu.memory_space<vmem>>) attributes {dimension_semantics = [#tpu.dimension_semantics<parallel>], iteration_bounds = array<i64: 1>, scalar_prefetch = 0 : i64, scratch_operands = 0 : i64, tpu.core_type = #tpu.core_type<tc>, window_params = [{transform_indices = @transform_0, window_bounds = array<i64: 16, 32>}, {transform_indices = @transform_1, window_bounds = array<i64: 16, 32>}, {pipeline_mode = #tpu.pipeline_mode<synchronous>, transform_indices = @transform_2, window_bounds = array<i64: 1, 32>}, {pipeline_mode = #tpu.pipeline_mode<synchronous>, transform_indices = @transform_3, window_bounds = array<i64: 1, 32>}, {pipeline_mode = #tpu.pipeline_mode<synchronous>, transform_indices = @transform_4, window_bounds = array<i64: 64, 32>}, {pipeline_mode = #tpu.pipeline_mode<synchronous>, transform_indices = @transform_5, window_bounds = array<i64: 1, 64>}, {pipeline_mode = #tpu.pipeline_mode<synchronous>, transform_indices = @transform_6, window_bounds = array<i64: 32, 64>}, {pipeline_mode = #tpu.pipeline_mode<synchronous>, transform_indices = @transform_7, window_bounds = array<i64: 1, 32>}, {pipeline_mode = #tpu.pipeline_mode<synchronous>, transform_indices = @transform_8, window_bounds = array<i64: 1, 32>}, {pipeline_mode = #tpu.pipeline_mode<synchronous>, transform_indices = @transform_9, window_bounds = array<i64: 1, 32>}, {transform_indices = @transform_10, window_bounds = array<i64: 16, 32>}]} {
    %c0 = arith.constant 0 : index
    %c0_0 = arith.constant 0 : index
    %0 = vector.load %arg1[%c0, %c0_0] : memref<16x32xf32, #tpu.memory_space<vmem>>, vector<16x32xf32>
    %c0_1 = arith.constant 0 : index
    %c0_2 = arith.constant 0 : index
    %1 = vector.load %arg2[%c0_1, %c0_2] : memref<16x32xf32, #tpu.memory_space<vmem>>, vector<16x32xf32>
    %2 = arith.addf %0, %1 : vector<16x32xf32>
    %cst = arith.constant dense<0.000000e+00> : vector<16xf32>
    %3 = vector.multi_reduction <add>, %2, %cst [1] : vector<16x32xf32> to vector<16xf32>
    %4 = vector.shape_cast %3 : vector<16xf32> to vector<16x1xf32>
    %cst_3 = arith.constant 3.200000e+01 : f32
    %5 = vector.broadcast %cst_3 : f32 to vector<16x1xf32>
    %6 = arith.divf %4, %5 : vector<16x1xf32>
    %7 = vector.broadcast %6 : vector<16x1xf32> to vector<16x32xf32>
    %8 = arith.subf %2, %7 : vector<16x32xf32>
    %9 = arith.mulf %8, %8 : vector<16x32xf32>
    %cst_4 = arith.constant dense<0.000000e+00> : vector<16xf32>
    %10 = vector.multi_reduction <add>, %9, %cst_4 [1] : vector<16x32xf32> to vector<16xf32>
    %11 = vector.shape_cast %10 : vector<16xf32> to vector<16x1xf32>
    %cst_5 = arith.constant 3.200000e+01 : f32
    %12 = vector.broadcast %cst_5 : f32 to vector<16x1xf32>
    %13 = arith.divf %11, %12 : vector<16x1xf32>
    %14 = vector.broadcast %6 : vector<16x1xf32> to vector<16x32xf32>
    %15 = arith.subf %2, %14 : vector<16x32xf32>
    %cst_6 = arith.constant 9.99999974E-6 : f32
    %16 = vector.broadcast %cst_6 : f32 to vector<16x1xf32>
    %17 = arith.addf %13, %16 : vector<16x1xf32>
    %18 = math.rsqrt %17 : vector<16x1xf32>
    %19 = vector.broadcast %18 : vector<16x1xf32> to vector<16x32xf32>
    %20 = arith.mulf %15, %19 : vector<16x32xf32>
    %c0_7 = arith.constant 0 : index
    %c0_8 = arith.constant 0 : index
    %21 = vector.load %arg3[%c0_7, %c0_8] : memref<1x32xf32, #tpu.memory_space<vmem>>, vector<1x32xf32>
    %22 = vector.broadcast %21 : vector<1x32xf32> to vector<16x32xf32>
    %23 = arith.mulf %20, %22 : vector<16x32xf32>
    %c0_9 = arith.constant 0 : index
    %c0_10 = arith.constant 0 : index
    %24 = vector.load %arg4[%c0_9, %c0_10] : memref<1x32xf32, #tpu.memory_space<vmem>>, vector<1x32xf32>
    %25 = vector.broadcast %24 : vector<1x32xf32> to vector<16x32xf32>
    %26 = arith.addf %23, %25 : vector<16x32xf32>
    %27 = arith.truncf %26 : vector<16x32xf32> to vector<16x32xbf16>
    %c0_11 = arith.constant 0 : index
    %c0_12 = arith.constant 0 : index
    %28 = vector.load %arg5[%c0_11, %c0_12] : memref<64x32xbf16, #tpu.memory_space<vmem>>, vector<64x32xbf16>
    %cst_13 = arith.constant dense<0.000000e+00> : vector<16x64xf32>
    %29 = tpu.matmul %27, %28, %cst_13 {dimension_numbers = #tpu.dot_dimension_numbers<[1], [1], [0], [0], [0, 0, 1, 0], [], []>} : vector<16x32xbf16>, vector<64x32xbf16>, vector<16x64xf32> -> vector<16x64xf32>
    %c0_14 = arith.constant 0 : index
    %c0_15 = arith.constant 0 : index
    %30 = vector.load %arg6[%c0_14, %c0_15] : memref<1x64xf32, #tpu.memory_space<vmem>>, vector<1x64xf32>
    %31 = vector.broadcast %30 : vector<1x64xf32> to vector<16x64xf32>
    %32 = arith.addf %29, %31 : vector<16x64xf32>
    %cst_16 = arith.constant 5.000000e-01 : f32
    %33 = vector.broadcast %cst_16 : f32 to vector<16x64xf32>
    %34 = arith.mulf %33, %32 : vector<16x64xf32>
    %cst_17 = arith.constant 0.707106769 : f32
    %35 = vector.broadcast %cst_17 : f32 to vector<16x64xf32>
    %36 = arith.mulf %32, %35 : vector<16x64xf32>
    %37 = math.absf %36 : vector<16x64xf32>
    %cst_18 = arith.constant 0.327591091 : f32
    %38 = vector.broadcast %cst_18 : f32 to vector<16x64xf32>
    %39 = arith.mulf %38, %37 : vector<16x64xf32>
    %cst_19 = arith.constant 1.000000e+00 : f32
    %40 = vector.broadcast %cst_19 : f32 to vector<16x64xf32>
    %41 = arith.addf %40, %39 : vector<16x64xf32>
    %cst_20 = arith.constant 1.000000e+00 : f32
    %42 = vector.broadcast %cst_20 : f32 to vector<16x64xf32>
    %43 = arith.divf %42, %41 : vector<16x64xf32>
    %cst_21 = arith.constant 1.06140542 : f32
    %44 = vector.broadcast %cst_21 : f32 to vector<16x64xf32>
    %45 = arith.mulf %44, %43 : vector<16x64xf32>
    %cst_22 = arith.constant -1.45315206 : f32
    %46 = vector.broadcast %cst_22 : f32 to vector<16x64xf32>
    %47 = arith.addf %45, %46 : vector<16x64xf32>
    %48 = arith.mulf %47, %43 : vector<16x64xf32>
    %cst_23 = arith.constant 1.42141378 : f32
    %49 = vector.broadcast %cst_23 : f32 to vector<16x64xf32>
    %50 = arith.addf %48, %49 : vector<16x64xf32>
    %51 = arith.mulf %50, %43 : vector<16x64xf32>
    %cst_24 = arith.constant -0.284496725 : f32
    %52 = vector.broadcast %cst_24 : f32 to vector<16x64xf32>
    %53 = arith.addf %51, %52 : vector<16x64xf32>
    %54 = arith.mulf %53, %43 : vector<16x64xf32>
    %cst_25 = arith.constant 0.254829586 : f32
    %55 = vector.broadcast %cst_25 : f32 to vector<16x64xf32>
    %56 = arith.addf %54, %55 : vector<16x64xf32>
    %57 = arith.mulf %56, %43 : vector<16x64xf32>
    %cst_26 = arith.constant 0.000000e+00 : f32
    %58 = vector.broadcast %cst_26 : f32 to vector<16x64xf32>
    %59 = arith.subf %58, %37 : vector<16x64xf32>
    %60 = arith.mulf %59, %37 : vector<16x64xf32>
    %61 = math.exp %60 : vector<16x64xf32>
    %62 = arith.mulf %57, %61 : vector<16x64xf32>
    %cst_27 = arith.constant 1.000000e+00 : f32
    %63 = vector.broadcast %cst_27 : f32 to vector<16x64xf32>
    %64 = arith.subf %63, %62 : vector<16x64xf32>
    %cst_28 = arith.constant 0.000000e+00 : f32
    %65 = vector.broadcast %cst_28 : f32 to vector<16x64xf32>
    %66 = arith.cmpf olt, %36, %65 : vector<16x64xf32>
    %cst_29 = arith.constant 0.000000e+00 : f32
    %67 = vector.broadcast %cst_29 : f32 to vector<16x64xf32>
    %68 = arith.subf %67, %64 : vector<16x64xf32>
    %69 = arith.select %66, %68, %64 : vector<16x64xi1>, vector<16x64xf32>
    %cst_30 = arith.constant 1.000000e+00 : f32
    %70 = vector.broadcast %cst_30 : f32 to vector<16x64xf32>
    %71 = arith.addf %70, %69 : vector<16x64xf32>
    %72 = arith.mulf %34, %71 : vector<16x64xf32>
    %73 = arith.truncf %72 : vector<16x64xf32> to vector<16x64xbf16>
    %c0_31 = arith.constant 0 : index
    %c0_32 = arith.constant 0 : index
    %74 = vector.load %arg7[%c0_31, %c0_32] : memref<32x64xbf16, #tpu.memory_space<vmem>>, vector<32x64xbf16>
    %cst_33 = arith.constant dense<0.000000e+00> : vector<16x32xf32>
    %75 = tpu.matmul %73, %74, %cst_33 {dimension_numbers = #tpu.dot_dimension_numbers<[1], [1], [0], [0], [0, 0, 1, 0], [], []>} : vector<16x64xbf16>, vector<32x64xbf16>, vector<16x32xf32> -> vector<16x32xf32>
    %c0_34 = arith.constant 0 : index
    %c0_35 = arith.constant 0 : index
    %76 = vector.load %arg8[%c0_34, %c0_35] : memref<1x32xf32, #tpu.memory_space<vmem>>, vector<1x32xf32>
    %77 = vector.broadcast %76 : vector<1x32xf32> to vector<16x32xf32>
    %78 = arith.addf %75, %77 : vector<16x32xf32>
    %79 = arith.addf %78, %26 : vector<16x32xf32>
    %cst_36 = arith.constant dense<0.000000e+00> : vector<16xf32>
    %80 = vector.multi_reduction <add>, %79, %cst_36 [1] : vector<16x32xf32> to vector<16xf32>
    %81 = vector.shape_cast %80 : vector<16xf32> to vector<16x1xf32>
    %cst_37 = arith.constant 3.200000e+01 : f32
    %82 = vector.broadcast %cst_37 : f32 to vector<16x1xf32>
    %83 = arith.divf %81, %82 : vector<16x1xf32>
    %84 = vector.broadcast %83 : vector<16x1xf32> to vector<16x32xf32>
    %85 = arith.subf %79, %84 : vector<16x32xf32>
    %86 = arith.mulf %85, %85 : vector<16x32xf32>
    %cst_38 = arith.constant dense<0.000000e+00> : vector<16xf32>
    %87 = vector.multi_reduction <add>, %86, %cst_38 [1] : vector<16x32xf32> to vector<16xf32>
    %88 = vector.shape_cast %87 : vector<16xf32> to vector<16x1xf32>
    %cst_39 = arith.constant 3.200000e+01 : f32
    %89 = vector.broadcast %cst_39 : f32 to vector<16x1xf32>
    %90 = arith.divf %88, %89 : vector<16x1xf32>
    %91 = vector.broadcast %83 : vector<16x1xf32> to vector<16x32xf32>
    %92 = arith.subf %79, %91 : vector<16x32xf32>
    %cst_40 = arith.constant 9.99999974E-6 : f32
    %93 = vector.broadcast %cst_40 : f32 to vector<16x1xf32>
    %94 = arith.addf %90, %93 : vector<16x1xf32>
    %95 = math.rsqrt %94 : vector<16x1xf32>
    %96 = vector.broadcast %95 : vector<16x1xf32> to vector<16x32xf32>
    %97 = arith.mulf %92, %96 : vector<16x32xf32>
    %c0_41 = arith.constant 0 : index
    %c0_42 = arith.constant 0 : index
    %98 = vector.load %arg9[%c0_41, %c0_42] : memref<1x32xf32, #tpu.memory_space<vmem>>, vector<1x32xf32>
    %99 = vector.broadcast %98 : vector<1x32xf32> to vector<16x32xf32>
    %100 = arith.mulf %97, %99 : vector<16x32xf32>
    %c0_43 = arith.constant 0 : index
    %c0_44 = arith.constant 0 : index
    %101 = vector.load %arg10[%c0_43, %c0_44] : memref<1x32xf32, #tpu.memory_space<vmem>>, vector<1x32xf32>
    %102 = vector.broadcast %101 : vector<1x32xf32> to vector<16x32xf32>
    %103 = arith.addf %100, %102 : vector<16x32xf32>
    %c0_45 = arith.constant 0 : index
    %c0_46 = arith.constant 0 : index
    %104 = vector.load %arg11[%c0_45, %c0_46] : memref<16x32xf32, #tpu.memory_space<vmem>>, vector<16x32xf32>
    tpu.vector_store %arg11[%c0_45, %c0_46], %103 {strides = array<i32>} : memref<16x32xf32, #tpu.memory_space<vmem>>, vector<16x32xf32>,
    return
  }
  func.func @transform_0(%arg0: i32) -> (i32, i32) {
    %c0_i32 = arith.constant 0 : i32
    %c0_i32_0 = arith.constant 0 : i32
    return %arg0, %c0_i32 : i32, i32
  }
  func.func @transform_1(%arg0: i32) -> (i32, i32) {
    %c0_i32 = arith.constant 0 : i32
    %c0_i32_0 = arith.constant 0 : i32
    return %arg0, %c0_i32 : i32, i32
  }
  func.func @transform_2(%arg0: i32) -> (i32, i32) {
    %c0_i32 = arith.constant 0 : i32
    %c0_i32_0 = arith.constant 0 : i32
    %c0_i32_1 = arith.constant 0 : i32
    return %c0_i32, %c0_i32_0 : i32, i32
  }
  func.func @transform_3(%arg0: i32) -> (i32, i32) {
    %c0_i32 = arith.constant 0 : i32
    %c0_i32_0 = arith.constant 0 : i32
    %c0_i32_1 = arith.constant 0 : i32
    return %c0_i32, %c0_i32_0 : i32, i32
  }
  func.func @transform_4(%arg0: i32) -> (i32, i32) {
    %c0_i32 = arith.constant 0 : i32
    %c0_i32_0 = arith.constant 0 : i32
    %c0_i32_1 = arith.constant 0 : i32
    return %c0_i32, %c0_i32_0 : i32, i32
  }
  func.func @transform_5(%arg0: i32) -> (i32, i32) {
    %c0_i32 = arith.constant 0 : i32
    %c0_i32_0 = arith.constant 0 : i32
    %c0_i32_1 = arith.constant 0 : i32
    return %c0_i32, %c0_i32_0 : i32, i32
  }
  func.func @transform_6(%arg0: i32) -> (i32, i32) {
    %c0_i32 = arith.constant 0 : i32
    %c0_i32_0 = arith.constant 0 : i32
    %c0_i32_1 = arith.constant 0 : i32
    return %c0_i32, %c0_i32_0 : i32, i32
  }
  func.func @transform_7(%arg0: i32) -> (i32, i32) {
    %c0_i32 = arith.constant 0 : i32
    %c0_i32_0 = arith.constant 0 : i32
    %c0_i32_1 = arith.constant 0 : i32
    return %c0_i32, %c0_i32_0 : i32, i32
  }
  func.func @transform_8(%arg0: i32) -> (i32, i32) {
    %c0_i32 = arith.constant 0 : i32
    %c0_i32_0 = arith.constant 0 : i32
    %c0_i32_1 = arith.constant 0 : i32
    return %c0_i32, %c0_i32_0 : i32, i32
  }
  func.func @transform_9(%arg0: i32) -> (i32, i32) {
    %c0_i32 = arith.constant 0 : i32
    %c0_i32_0 = arith.constant 0 : i32
    %c0_i32_1 = arith.constant 0 : i32
    return %c0_i32, %c0_i32_0 : i32, i32
  }
  func.func @transform_10(%arg0: i32) -> (i32, i32) {
    %c0_i32 = arith.constant 0 : i32
    %c0_i32_0 = arith.constant 0 : i32
    return %arg0, %c0_i32 : i32, i32
  }
}

</mosaic_0001>

<llo_original>
// kernel: decoder_block.6
$region0: #{decoder_block.6}
  #allocation0 [shape = 'u32[]', space=smem, size = 0x4, offset = 0x4, fixed_abs, tag = 'smem constant byte address 0x4 - core index']
  #allocation1 [shape = 'u32[144,128]{1,0:T(1,128)}', space=vmem, size = 0x12000, scoped, tag = 'internal scratch']
  %s0 = inlined_call_operand.vmem [shape: f32[16,32], index: 0, kind: input, shape index: {}]
  %s1 = inlined_call_operand.vmem [shape: bf16[32,32], index: 1, kind: input, shape index: {}]
  %s2 = inlined_call_operand.vmem [shape: f32[1,32], index: 2, kind: input, shape index: {}]
  %s3 = inlined_call_operand.vmem [shape: bf16[32,32], index: 3, kind: input, shape index: {}]
  %s4 = inlined_call_operand.vmem [shape: f32[1,32], index: 4, kind: input, shape index: {}]
  %s5 = inlined_call_operand.vmem [shape: bf16[32,32], index: 5, kind: input, shape index: {}]
  %s6 = inlined_call_operand.vmem [shape: f32[1,32], index: 6, kind: input, shape index: {}]
  %s7 = inlined_call_operand.vmem [shape: f32[16,32], index: 7, kind: output, shape index: {0}]
  %s8 = inlined_call_operand.vmem [shape: f32[16,32], index: 8, kind: output, shape index: {1}]
  %s9 = inlined_call_operand.vmem [shape: f32[16,32], index: 9, kind: output, shape index: {2}]
  %10 = xla_tuple %s7, %s8, %s9
  %s11 = sld [smem:[#allocation0]]
  $region54: #{decoder_block.6} parent=0
    _
  %s13 = ssub.s32 1, %s11
  %s14 = scalar_select 0, %s13, %s11
  // Predicated region
  $region2: #{decoder_block.6} parent=0 // pred_check
    _
  $region3: #{decoder_block.6} parent=0 // pred_check_branch
    %16 = sbr.rel (0) target = $region5
  $region4: #{decoder_block.6} parent=0 // pred_region
    _
  $region5: #{decoder_block.6} parent=0 // pred_fallthru
    _
  // Predicated region
  $region6: #{decoder_block.6} parent=0 // pred_check
    _
  $region7: #{decoder_block.6} parent=0 // pred_check_branch
    %18 = sbr.rel (0) target = $region9
  $region8: #{decoder_block.6} parent=0 // pred_region
    _
  $region9: #{decoder_block.6} parent=0 // pred_fallthru
    _
  // Predicated region
  $region10: #{decoder_block.6} parent=0 // pred_check
    _
  $region11: #{decoder_block.6} parent=0 // pred_check_branch
    %20 = sbr.rel (0) target = $region13
  $region12: #{decoder_block.6} parent=0 // pred_region
    _
  $region13: #{decoder_block.6} parent=0 // pred_fallthru
    _
  // Predicated region
  $region14: #{decoder_block.6} parent=0 // pred_check
    _
  $region15: #{decoder_block.6} parent=0 // pred_check_branch
    %22 = sbr.rel (0) target = $region17
  $region16: #{decoder_block.6} parent=0 // pred_region
    _
  $region17: #{decoder_block.6} parent=0 // pred_fallthru
    _
  // Predicated region
  $region18: #{decoder_block.6} parent=0 // pred_check
    _
  $region19: #{decoder_block.6} parent=0 // pred_check_branch
    %24 = sbr.rel (0) target = $region21
  $region20: #{decoder_block.6} parent=0 // pred_region
    _
  $region21: #{decoder_block.6} parent=0 // pred_fallthru
    _
  // Predicated region
  $region22: #{decoder_block.6} parent=0 // pred_check
    _
  $region23: #{decoder_block.6} parent=0 // pred_check_branch
    %26 = sbr.rel (0) target = $region25
  $region24: #{decoder_block.6} parent=0 // pred_region
    _
  $region25: #{decoder_block.6} parent=0 // pred_fallthru
    _
  // Predicated region
  $region26: #{decoder_block.6} parent=0 // pred_check
    _
  $region27: #{decoder_block.6} parent=0 // pred_check_branch
    %28 = sbr.rel (0) target = $region29
  $region28: #{decoder_block.6} parent=0 // pred_region
    _
  $region29: #{decoder_block.6} parent=0 // pred_fallthru
    _
  %v30 = vld [vmem:[%s0] sm:$0xff]
  %v31 = vld [vmem:[%s0 + $0x8] sm:$0xff]
  %v32 = vpack.c.bf16 %v31, %v30
  %v33 = vld [vmem:[%s1] sm:$0xf]
  %v34 = vld [vmem:[%s1 + $0x4] sm:$0xf]
  %v35 = vld [vmem:[%s1 + $0x8] sm:$0xf]
  %v36 = vld [vmem:[%s1 + $0xc] sm:$0xf]
  %v37 = vld [vmem:[%s2] sm:$0x1]
  %v39 = vlaneseq
  %v40 = vshrl.u32 %v39, 7
  %v41 = vsub.s32 0, %v40
  %v42 = vrot.slane %v37, %v41
  %v48 = vunpack.c.l.b16 %v33
  %v49 = vunpack.c.l.b16 %v34
  %v50 = vunpack.c.l.b16 %v35
  %v51 = vunpack.c.l.b16 %v36
  %v52 = vpack.c.b16 %v49, %v48
  %v53 = vpack.c.b16 %v51, %v50
  %vm54 = vcmask 261120
  %v56 = vsel %vm54, %v32, 0
  %v59 = vsel %vm54, %v52, 0
  %v62 = vsel %vm54, %v53, 0
  %64 = vmatprep.subr.bf16.mxu0 0
  %65 = vmatpush1.bf16.xpose.msra.mxu0 %v59
  %66 = vmatprep.subr.bf16.mxu0 0
  %67 = vmatpush1.bf16.xpose.msra.mxu0 %v62
  %68 = vmatprep.subr.bf16.mxu0 0
  %69 = vmatpush1.bf16.xpose.msra.mxu0 0
  %70 = vmatprep.subr.bf16.mxu0 0
  %71 = vmatpush1.bf16.xpose.msra.mxu0 0
  %72 = vmatprep.subr.bf16.mxu0 0
  %73 = vmatpush1.bf16.xpose.msra.mxu0 0
  %74 = vmatprep.subr.bf16.mxu0 0
  %75 = vmatpush1.bf16.xpose.msra.mxu0 0
  %76 = vmatprep.subr.bf16.mxu0 0
  %77 = vmatpush1.bf16.xpose.msra.mxu0 0
  %78 = vmatprep.subr.bf16.mxu0 0
  %79 = vmatpush1.bf16.xpose.msra.mxu0 0
  %80 = vmatprep.subr.bf16.mxu0 0
  %81 = vmatpush1.bf16.xpose.msra.mxu0 0
  %82 = vmatprep.subr.bf16.mxu0 0
  %83 = vmatpush1.bf16.xpose.msra.mxu0 0
  %84 = vmatprep.subr.bf16.mxu0 0
  %85 = vmatpush1.bf16.xpose.msra.mxu0 0
  %86 = vmatprep.subr.bf16.mxu0 0
  %87 = vmatpush1.bf16.xpose.msra.mxu0 0
  %88 = vmatprep.subr.bf16.mxu0 0
  %89 = vmatpush1.bf16.xpose.msra.mxu0 0
  %90 = vmatprep.subr.bf16.mxu0 0
  %91 = vmatpush1.bf16.xpose.msra.mxu0 0
  %92 = vmatprep.subr.bf16.mxu0 0
  %93 = vmatpush1.bf16.xpose.msra.mxu0 0
  %94 = vmatprep.subr.bf16.mxu0 0
  %95 = vmatpush1.bf16.xpose.msra.mxu0 0
  %96 = vmatprep.mubr.bf16.mxu0 0
  %97 = vmatmul.mubr.bf16.gmra.mrb[0].mxu0 %v56
  %v98 = vpop.f32.mrb[0].mxu0
  %v99 = vadd.f32 %v42, %v98
  %v100 = vpop.f32.mrb[0].mxu0
  %v101 = vpop.f32.mrb[0].mxu0
  %v102 = vadd.f32 %v42, %v101
  %v103 = vpop.f32.mrb[0].mxu0
  %104 = vdwg.mxu0
  %105 = vst.msk [vmem:[%s7] sm:$0xff] %vm54, %v99
  %106 = vst.msk [vmem:[%s7 + $0x8] sm:$0xff] %vm54, %v102
  %v107 = vld [vmem:[%s3] sm:$0xf]
  %v108 = vld [vmem:[%s3 + $0x4] sm:$0xf]
  %v109 = vld [vmem:[%s3 + $0x8] sm:$0xf]
  %v110 = vld [vmem:[%s3 + $0xc] sm:$0xf]
  %v111 = vld [vmem:[%s4] sm:$0x1]
  %v113 = vlaneseq
  %v114 = vshrl.u32 %v113, 7
  %v115 = vsub.s32 0, %v114
  %v116 = vrot.slane %v111, %v115
  %v122 = vunpack.c.l.b16 %v107
  %v123 = vunpack.c.l.b16 %v108
  %v124 = vunpack.c.l.b16 %v109
  %v125 = vunpack.c.l.b16 %v110
  %v126 = vpack.c.b16 %v123, %v122
  %v127 = vpack.c.b16 %v125, %v124
  %v129 = vsel %vm54, %v126, 0
  %v132 = vsel %vm54, %v127, 0
  %134 = vmatprep.subr.bf16.mxu0 0
  %135 = vmatpush1.bf16.xpose.msra.mxu0 %v129
  %136 = vmatprep.subr.bf16.mxu0 0
  %137 = vmatpush1.bf16.xpose.msra.mxu0 %v132
  %138 = vmatprep.subr.bf16.mxu0 0
  %139 = vmatpush1.bf16.xpose.msra.mxu0 0
  %140 = vmatprep.subr.bf16.mxu0 0
  %141 = vmatpush1.bf16.xpose.msra.mxu0 0
  %142 = vmatprep.subr.bf16.mxu0 0
  %143 = vmatpush1.bf16.xpose.msra.mxu0 0
  %144 = vmatprep.subr.bf16.mxu0 0
  %145 = vmatpush1.bf16.xpose.msra.mxu0 0
  %146 = vmatprep.subr.bf16.mxu0 0
  %147 = vmatpush1.bf16.xpose.msra.mxu0 0
  %148 = vmatprep.subr.bf16.mxu0 0
  %149 = vmatpush1.bf16.xpose.msra.mxu0 0
  %150 = vmatprep.subr.bf16.mxu0 0
  %151 = vmatpush1.bf16.xpose.msra.mxu0 0
  %152 = vmatprep.subr.bf16.mxu0 0
  %153 = vmatpush1.bf16.xpose.msra.mxu0 0
  %154 = vmatprep.subr.bf16.mxu0 0
  %155 = vmatpush1.bf16.xpose.msra.mxu0 0
  %156 = vmatprep.subr.bf16.mxu0 0
  %157 = vmatpush1.bf16.xpose.msra.mxu0 0
  %158 = vmatprep.subr.bf16.mxu0 0
  %159 = vmatpush1.bf16.xpose.msra.mxu0 0
  %160 = vmatprep.subr.bf16.mxu0 0
  %161 = vmatpush1.bf16.xpose.msra.mxu0 0
  %162 = vmatprep.subr.bf16.mxu0 0
  %163 = vmatpush1.bf16.xpose.msra.mxu0 0
  %164 = vmatprep.subr.bf16.mxu0 0
  %165 = vmatpush1.bf16.xpose.msra.mxu0 0
  %166 = vmatprep.mubr.bf16.mxu0 0
  %167 = vmatmul.mubr.bf16.gmra.mrb[0].mxu0 %v56
  %v168 = vpop.f32.mrb[0].mxu0
  %v169 = vadd.f32 %v116, %v168
  %v170 = vpop.f32.mrb[0].mxu0
  %v171 = vpop.f32.mrb[0].mxu0
  %v172 = vadd.f32 %v116, %v171
  %v173 = vpop.f32.mrb[0].mxu0
  %174 = vdwg.mxu0
  %175 = vst.msk [vmem:[%s8] sm:$0xff] %vm54, %v169
  %176 = vst.msk [vmem:[%s8 + $0x8] sm:$0xff] %vm54, %v172
  %v177 = vld [vmem:[%s5] sm:$0xf]
  %v178 = vld [vmem:[%s5 + $0x4] sm:$0xf]
  %v179 = vld [vmem:[%s5 + $0x8] sm:$0xf]
  %v180 = vld [vmem:[%s5 + $0xc] sm:$0xf]
  %v181 = vld [vmem:[%s6] sm:$0x1]
  %v183 = vlaneseq
  %v184 = vshrl.u32 %v183, 7
  %v185 = vsub.s32 0, %v184
  %v186 = vrot.slane %v181, %v185
  %v192 = vunpack.c.l.b16 %v177
  %v193 = vunpack.c.l.b16 %v178
  %v194 = vunpack.c.l.b16 %v179
  %v195 = vunpack.c.l.b16 %v180
  %v196 = vpack.c.b16 %v193, %v192
  %v197 = vpack.c.b16 %v195, %v194
  %v199 = vsel %vm54, %v196, 0
  %v202 = vsel %vm54, %v197, 0
  %204 = vmatprep.subr.bf16.mxu0 0
  %205 = vmatpush1.bf16.xpose.msra.mxu0 %v199
  %206 = vmatprep.subr.bf16.mxu0 0
  %207 = vmatpush1.bf16.xpose.msra.mxu0 %v202
  %208 = vmatprep.subr.bf16.mxu0 0
  %209 = vmatpush1.bf16.xpose.msra.mxu0 0
  %210 = vmatprep.subr.bf16.mxu0 0
  %211 = vmatpush1.bf16.xpose.msra.mxu0 0
  %212 = vmatprep.subr.bf16.mxu0 0
  %213 = vmatpush1.bf16.xpose.msra.mxu0 0
  %214 = vmatprep.subr.bf16.mxu0 0
  %215 = vmatpush1.bf16.xpose.msra.mxu0 0
  %216 = vmatprep.subr.bf16.mxu0 0
  %217 = vmatpush1.bf16.xpose.msra.mxu0 0
  %218 = vmatprep.subr.bf16.mxu0 0
  %219 = vmatpush1.bf16.xpose.msra.mxu0 0
  %220 = vmatprep.subr.bf16.mxu0 0
  %221 = vmatpush1.bf16.xpose.msra.mxu0 0
  %222 = vmatprep.subr.bf16.mxu0 0
  %223 = vmatpush1.bf16.xpose.msra.mxu0 0
  %224 = vmatprep.subr.bf16.mxu0 0
  %225 = vmatpush1.bf16.xpose.msra.mxu0 0
  %226 = vmatprep.subr.bf16.mxu0 0
  %227 = vmatpush1.bf16.xpose.msra.mxu0 0
  %228 = vmatprep.subr.bf16.mxu0 0
  %229 = vmatpush1.bf16.xpose.msra.mxu0 0
  %230 = vmatprep.subr.bf16.mxu0 0
  %231 = vmatpush1.bf16.xpose.msra.mxu0 0
  %232 = vmatprep.subr.bf16.mxu0 0
  %233 = vmatpush1.bf16.xpose.msra.mxu0 0
  %234 = vmatprep.subr.bf16.mxu0 0
  %235 = vmatpush1.bf16.xpose.msra.mxu0 0
  %236 = vmatprep.mubr.bf16.mxu0 0
  %237 = vmatmul.mubr.bf16.gmra.mrb[0].mxu0 %v56
  %v238 = vpop.f32.mrb[0].mxu0
  %v239 = vadd.f32 %v186, %v238
  %v240 = vpop.f32.mrb[0].mxu0
  %v241 = vpop.f32.mrb[0].mxu0
  %v242 = vadd.f32 %v186, %v241
  %v243 = vpop.f32.mrb[0].mxu0
  %244 = vdwg.mxu0
  %245 = vst.msk [vmem:[%s9] sm:$0xff] %vm54, %v239
  %246 = vst.msk [vmem:[%s9 + $0x8] sm:$0xff] %vm54, %v242
  // Predicated region
  $region30: #{decoder_block.6} parent=0 // pred_check
    _
  $region31: #{decoder_block.6} parent=0 // pred_check_branch
    %248 = sbr.rel (0) target = $region33
  $region32: #{decoder_block.6} parent=0 // pred_region
    _
  $region33: #{decoder_block.6} parent=0 // pred_fallthru
    _
  // Predicated region
  $region34: #{decoder_block.6} parent=0 // pred_check
    _
  $region35: #{decoder_block.6} parent=0 // pred_check_branch
    %250 = sbr.rel (0) target = $region37
  $region36: #{decoder_block.6} parent=0 // pred_region
    _
  $region37: #{decoder_block.6} parent=0 // pred_fallthru
    _
  // Predicated region
  $region38: #{decoder_block.6} parent=0 // pred_check
    _
  $region39: #{decoder_block.6} parent=0 // pred_check_branch
    %252 = sbr.rel (0) target = $region41
  $region40: #{decoder_block.6} parent=0 // pred_region
    _
  $region41: #{decoder_block.6} parent=0 // pred_fallthru
    _
  // Predicated region
  $region42: #{decoder_block.6} parent=0 // pred_check
    _
  $region43: #{decoder_block.6} parent=0 // pred_check_branch
    %254 = sbr.rel (0) target = $region45
  $region44: #{decoder_block.6} parent=0 // pred_region
    _
  $region45: #{decoder_block.6} parent=0 // pred_fallthru
    _
  // Predicated region
  $region46: #{decoder_block.6} parent=0 // pred_check
    _
  $region47: #{decoder_block.6} parent=0 // pred_check_branch
    %256 = sbr.rel (0) target = $region49
  $region48: #{decoder_block.6} parent=0 // pred_region
    _
  $region49: #{decoder_block.6} parent=0 // pred_fallthru
    _
  // Predicated region
  $region50: #{decoder_block.6} parent=0 // pred_check
    _
  $region51: #{decoder_block.6} parent=0 // pred_check_branch
    %258 = sbr.rel (0) target = $region53
  $region52: #{decoder_block.6} parent=0 // pred_region
    _
  $region53: #{decoder_block.6} parent=0 // pred_fallthru
    _

// kernel: decoder_block.7
$region0: #{decoder_block.7}
  #allocation0 [shape = 'u32[]', space=smem, size = 0x4, offset = 0x4, fixed_abs, tag = 'smem constant byte address 0x4 - core index']
  #allocation1 [shape = 'u32[144,128]{1,0:T(1,128)}', space=vmem, size = 0x12000, scoped, tag = 'internal scratch']
  #allocation2 [shape = 'f32[2,8,1]{2,1,0:T(8,128)}', space=vmem, size = 0x2000, scoped, tag = 'scratch operand']
  #allocation3 [shape = 'f32[2,8,1]{2,1,0:T(8,128)}', space=vmem, size = 0x2000, scoped, tag = 'scratch operand']
  #allocation4 [shape = 'f32[2,8,16]{2,1,0:T(8,128)}', space=vmem, size = 0x2000, scoped, tag = 'scratch operand']
  %s0 = inlined_call_operand.vmem [shape: f32[2,2,8,16], index: 0, kind: input, shape index: {}]
  %s1 = inlined_call_operand.vmem [shape: f32[2,2,8,16], index: 1, kind: input, shape index: {}]
  %s2 = inlined_call_operand.vmem [shape: f32[2,2,8,16], index: 2, kind: input, shape index: {}]
  %s3 = inlined_call_operand.vmem [shape: f32[2,2,8,16], index: 3, kind: output, shape index: {}]
  %s4 = sld [smem:[#allocation0]]
  $region53: #{decoder_block.7} parent=0
    _
  %s6 = ssub.s32 1, %s4
  %s7 = scalar_select 0, %s6, %s4
  loop: start=0, step=1, limit=4
  $region2: #{decoder_block.7} parent=0 // loop_pre_header
    _
  $region3: #{decoder_block.7} parent=0 // loop_header
    %s9 = sphi 0, %s13
    %p10 = scmp.ge.s32.totalorder %s9, 4
    %s16 = sphi 0, %s35
    %s17 = sphi 0, %s31
    %s18 = sphi 0, %s27
    %s19 = sphi 0, %s16
    %s20 = sphi 0, %s17
    %s21 = sphi 0, %s18
    %s22 = sphi 0, %s19
    %s23 = sphi 0, %s20
    %s24 = sphi 0, %s21
    %s40 = sphi 0, %s42
    %s43 = sphi 0, %s40
    %s44 = sphi 0, %s43
    %s60 = sphi 0, %s44
    %s68 = sphi 0, %s70
    %s71 = sphi 0, %s68
    %s72 = sphi 0, %s71
    %s88 = sphi 0, %s72
    %s96 = sphi 0, %s98
    %s99 = sphi 0, %s96
    %s100 = sphi 0, %s99
    %s116 = sphi 0, %s100
    %s124 = sphi 0, %s126
    %s127 = sphi 0, %s124
    %s128 = sphi 0, %s127
    %s144 = sphi 0, %s128
  $region4: #{decoder_block.7} parent=0 // loop_header_branch
    %12 = sbr.rel (%p10) target = $region8
  $region5: #{decoder_block.7} parent=0 // loop_body
    %s14 = ssub.s32 %s9, 1
    %s15 = ssub.s32 %s9, 2
    %s25 = sadd.s32 1, %s18
    %p26 = scmp.ge.s32.totalorder %s25, 1
    %s27 = scalar_select %p26, 0, %s25
    %s28 = sadd.s32 1, %s17
    %s29 = scalar_select %p26, %s28, %s17
    %p30 = scmp.ge.s32.totalorder %s29, 1
    %s31 = scalar_select %p30, 0, %s29
    %s32 = sadd.s32 1, %s16
    %s33 = scalar_select %p30, %s32, %s16
    %p34 = scmp.ge.s32.totalorder %s33, 2
    %s35 = scalar_select %p34, 0, %s33
    %s36 = ssub.s32 %s16, %s35
    %s37 = ssub.s32 %s17, %s31
    %s38 = sor.u32 %s36, %s37
    %p39 = scmp.eq.s32.totalorder %s38, 0
    %s41 = sadd.s32 %s40, 1
    %s42 = scalar_select %p39, %s40, %s41
    %p45 = pneg %p39
    %p46 = scmp.eq.s32.totalorder %s9, 1
    %p47 = por %p45, %p46
    %p48 = scmp.ne.s32.totalorder %s40, %s43
    %p49 = scmp.eq.s32.totalorder %s9, 0
    %p50 = por %p48, %p49
    %p51 = scmp.ne.s32.totalorder %s40, %s43
    %p52 = scmp.eq.s32.totalorder %s14, 1
    %p53 = por %p51, %p52
    %p54 = scmp.ne.s32.totalorder %s43, %s44
    %p55 = scmp.eq.s32.totalorder %s14, 0
    %p56 = por %p54, %p55
    %p57 = scmp.ne.s32.totalorder %s43, %s44
    %p58 = scmp.eq.s32.totalorder %s15, 1
    %p59 = por %p57, %p58
    %p61 = scmp.ne.s32.totalorder %s44, %s60
    %p62 = scmp.eq.s32.totalorder %s15, 0
    %p63 = por %p61, %p62
    %s64 = ssub.s32 %s16, %s35
    %s65 = ssub.s32 %s18, %s27
    %s66 = sor.u32 %s64, %s65
    %p67 = scmp.eq.s32.totalorder %s66, 0
    %s69 = sadd.s32 %s68, 1
    %s70 = scalar_select %p67, %s68, %s69
    %p73 = pneg %p67
    %p74 = scmp.eq.s32.totalorder %s9, 1
    %p75 = por %p73, %p74
    %p76 = scmp.ne.s32.totalorder %s68, %s71
    %p77 = scmp.eq.s32.totalorder %s9, 0
    %p78 = por %p76, %p77
    %p79 = scmp.ne.s32.totalorder %s68, %s71
    %p80 = scmp.eq.s32.totalorder %s14, 1
    %p81 = por %p79, %p80
    %p82 = scmp.ne.s32.totalorder %s71, %s72
    %p83 = scmp.eq.s32.totalorder %s14, 0
    %p84 = por %p82, %p83
    %p85 = scmp.ne.s32.totalorder %s71, %s72
    %p86 = scmp.eq.s32.totalorder %s15, 1
    %p87 = por %p85, %p86
    %p89 = scmp.ne.s32.totalorder %s72, %s88
    %p90 = scmp.eq.s32.totalorder %s15, 0
    %p91 = por %p89, %p90
    %s92 = ssub.s32 %s16, %s35
    %s93 = ssub.s32 %s18, %s27
    %s94 = sor.u32 %s92, %s93
    %p95 = scmp.eq.s32.totalorder %s94, 0
    %s97 = sadd.s32 %s96, 1
    %s98 = scalar_select %p95, %s96, %s97
    %p101 = pneg %p95
    %p102 = scmp.eq.s32.totalorder %s9, 1
    %p103 = por %p101, %p102
    %p104 = scmp.ne.s32.totalorder %s96, %s99
    %p105 = scmp.eq.s32.totalorder %s9, 0
    %p106 = por %p104, %p105
    %p107 = scmp.ne.s32.totalorder %s96, %s99
    %p108 = scmp.eq.s32.totalorder %s14, 1
    %p109 = por %p107, %p108
    %p110 = scmp.ne.s32.totalorder %s99, %s100
    %p111 = scmp.eq.s32.totalorder %s14, 0
    %p112 = por %p110, %p111
    %p113 = scmp.ne.s32.totalorder %s99, %s100
    %p114 = scmp.eq.s32.totalorder %s15, 1
    %p115 = por %p113, %p114
    %p117 = scmp.ne.s32.totalorder %s100, %s116
    %p118 = scmp.eq.s32.totalorder %s15, 0
    %p119 = por %p117, %p118
    %s120 = ssub.s32 %s16, %s35
    %s121 = ssub.s32 %s17, %s31
    %s122 = sor.u32 %s120, %s121
    %p123 = scmp.eq.s32.totalorder %s122, 0
    %s125 = sadd.s32 %s124, 1
    %s126 = scalar_select %p123, %s124, %s125
    %p129 = pneg %p123
    %p130 = scmp.eq.s32.totalorder %s9, 1
    %p131 = por %p129, %p130
    %p132 = scmp.ne.s32.totalorder %s124, %s127
    %p133 = scmp.eq.s32.totalorder %s9, 0
    %p134 = por %p132, %p133
    %p135 = scmp.ne.s32.totalorder %s124, %s127
    %p136 = scmp.eq.s32.totalorder %s14, 1
    %p137 = por %p135, %p136
    %p138 = scmp.ne.s32.totalorder %s127, %s128
    %p139 = scmp.eq.s32.totalorder %s14, 0
    %p140 = por %p138, %p139
    %p141 = scmp.ne.s32.totalorder %s127, %s128
    %p142 = scmp.eq.s32.totalorder %s15, 1
    %p143 = por %p141, %p142
    %p145 = scmp.ne.s32.totalorder %s128, %s144
    %p146 = scmp.eq.s32.totalorder %s15, 0
    %p147 = por %p145, %p146
    %p148 = scmp.le.s32.totalorder 1, %s9
    %p149 = scmp.lt.s32.totalorder %s9, 3
    %p150 = pnand %p148, %p149
    %p151 = pneg %p150
    // Predicated region
    $region9: #{decoder_block.7} parent=5 // pred_check
      _
    $region10: #{decoder_block.7} parent=5 // pred_check_branch
      %153 = sbr.rel (%p150) target = $region12
    $region11: #{decoder_block.7} parent=5 // pred_region
      %s154 = ssub.s32 %s9, 1
    $region12: #{decoder_block.7} parent=5 // pred_fallthru
      _
    %p155 = scmp.lt.s32.totalorder %s9, 2
    // Predicated region
    $region13: #{decoder_block.7} parent=5 // pred_check
      %p156 = pneg %p155
    $region14: #{decoder_block.7} parent=5 // pred_check_branch
      %158 = sbr.rel (%p156) target = $region16
    $region15: #{decoder_block.7} parent=5 // pred_region
      // Predicated region
      $region17: #{decoder_block.7} parent=15 // pred_check
        %p159 = pneg %p50
      $region18: #{decoder_block.7} parent=15 // pred_check_branch
        %161 = sbr.rel (%p159) target = $region20
      $region19: #{decoder_block.7} parent=15 // pred_region
        %p162 = scmp.lt.s32.totalorder %s16, 1
        %s163 = scalar_select %p162, %s16, 1
        %p164 = scmp.lt.s32.totalorder %s17, 0
        %s165 = scalar_select %p164, %s17, 0
        %s166 = smul.addr %s163, 2
        %s167 = sadd.s32 %s165, %s166
        %s168 = smul.addr %s167, 8
        %s169 = scalar_lea.vmem %s0, %s168
      $region20: #{decoder_block.7} parent=15 // pred_fallthru
        _
      // Predicated region
      $region21: #{decoder_block.7} parent=15 // pred_check
        %p170 = pneg %p78
      $region22: #{decoder_block.7} parent=15 // pred_check_branch
        %172 = sbr.rel (%p170) target = $region24
      $region23: #{decoder_block.7} parent=15 // pred_region
        %p173 = scmp.lt.s32.totalorder %s16, 1
        %s174 = scalar_select %p173, %s16, 1
        %p175 = scmp.lt.s32.totalorder %s18, 0
        %s176 = scalar_select %p175, %s18, 0
        %s177 = smul.addr %s174, 2
        %s178 = sadd.s32 %s176, %s177
        %s179 = smul.addr %s178, 8
        %s180 = scalar_lea.vmem %s1, %s179
      $region24: #{decoder_block.7} parent=15 // pred_fallthru
        _
      // Predicated region
      $region25: #{decoder_block.7} parent=15 // pred_check
        %p181 = pneg %p106
      $region26: #{decoder_block.7} parent=15 // pred_check_branch
        %183 = sbr.rel (%p181) target = $region28
      $region27: #{decoder_block.7} parent=15 // pred_region
        %p184 = scmp.lt.s32.totalorder %s16, 1
        %s185 = scalar_select %p184, %s16, 1
        %p186 = scmp.lt.s32.totalorder %s18, 0
        %s187 = scalar_select %p186, %s18, 0
        %s188 = smul.addr %s185, 2
        %s189 = sadd.s32 %s187, %s188
        %s190 = smul.addr %s189, 8
        %s191 = scalar_lea.vmem %s2, %s190
      $region28: #{decoder_block.7} parent=15 // pred_fallthru
        _
    $region16: #{decoder_block.7} parent=5 // pred_fallthru
      _
    %p192 = scmp.le.s32.totalorder 1, %s9
    %p193 = scmp.lt.s32.totalorder %s9, 3
    %p194 = pnand %p192, %p193
    %p195 = pneg %p194
    // Predicated region
    $region29: #{decoder_block.7} parent=5 // pred_check
      _
    $region30: #{decoder_block.7} parent=5 // pred_check_branch
      %197 = sbr.rel (%p194) target = $region32
    $region31: #{decoder_block.7} parent=5 // pred_region
      %s198 = ssub.s32 %s9, 1
      %p199 = scmp.lt.s32.totalorder %s19, 1
      %s200 = scalar_select %p199, %s19, 1
      %p201 = scmp.lt.s32.totalorder %s20, 0
      %s202 = scalar_select %p201, %s20, 0
      %s203 = smul.addr %s200, 2
      %s204 = sadd.s32 %s202, %s203
      %s205 = smul.addr %s204, 8
      %s206 = scalar_lea.vmem %s0, %s205
      %p207 = pneg %p56
      %p208 = pneg %p53
      %p209 = scmp.lt.s32.totalorder %s19, 1
      %s210 = scalar_select %p209, %s19, 1
      %p211 = scmp.lt.s32.totalorder %s21, 0
      %s212 = scalar_select %p211, %s21, 0
      %s213 = smul.addr %s210, 2
      %s214 = sadd.s32 %s212, %s213
      %s215 = smul.addr %s214, 8
      %s216 = scalar_lea.vmem %s1, %s215
      %p217 = pneg %p84
      %p218 = pneg %p81
      %p219 = scmp.lt.s32.totalorder %s19, 1
      %s220 = scalar_select %p219, %s19, 1
      %p221 = scmp.lt.s32.totalorder %s21, 0
      %s222 = scalar_select %p221, %s21, 0
      %s223 = smul.addr %s220, 2
      %s224 = sadd.s32 %s222, %s223
      %s225 = smul.addr %s224, 8
      %s226 = scalar_lea.vmem %s2, %s225
      %p227 = pneg %p112
      %p228 = pneg %p109
      %p229 = pneg %p140
      %p230 = pneg %p137
      %p231 = scmp.lt.s32.totalorder %s19, 1
      %s232 = scalar_select %p231, %s19, 1
      %p233 = scmp.lt.s32.totalorder %s20, 0
      %s234 = scalar_select %p233, %s20, 0
      %s235 = smul.addr %s232, 2
      %s236 = sadd.s32 %s234, %s235
      %s237 = smul.addr %s236, 8
      %s238 = scalar_lea.vmem %s3, %s237
      %p239 = scmp.lt.s32.totalorder %s19, 1
      %s240 = scalar_select %p239, %s19, 1
      %p241 = scmp.lt.s32.totalorder %s20, 0
      %s242 = scalar_select %p241, %s20, 0
      %s243 = smul.addr %s240, 2
      %s244 = sadd.s32 %s242, %s243
      %s245 = smul.addr %s244, 8
      %s246 = scalar_lea.vmem %s0, %s245
      %p247 = scmp.lt.s32.totalorder %s19, 1
      %s248 = scalar_select %p247, %s19, 1
      %p249 = scmp.lt.s32.totalorder %s21, 0
      %s250 = scalar_select %p249, %s21, 0
      %s251 = smul.addr %s248, 2
      %s252 = sadd.s32 %s250, %s251
      %s253 = smul.addr %s252, 8
      %s254 = scalar_lea.vmem %s1, %s253
      %p255 = scmp.lt.s32.totalorder %s19, 1
      %s256 = scalar_select %p255, %s19, 1
      %p257 = scmp.lt.s32.totalorder %s21, 0
      %s258 = scalar_select %p257, %s21, 0
      %s259 = smul.addr %s256, 2
      %s260 = sadd.s32 %s258, %s259
      %s261 = smul.addr %s260, 8
      %s262 = scalar_lea.vmem %s2, %s261
      %p263 = scmp.lt.s32.totalorder %s19, 1
      %s264 = scalar_select %p263, %s19, 1
      %p265 = scmp.lt.s32.totalorder %s20, 0
      %s266 = scalar_select %p265, %s20, 0
      %s267 = smul.addr %s264, 2
      %s268 = sadd.s32 %s266, %s267
      %s269 = smul.addr %s268, 8
      %s270 = scalar_lea.vmem %s3, %s269
      %p272 = scmp.eq.s32.totalorder %s21, 0
      // Predicated region
      $region33: #{decoder_block.7} parent=31 // pred_check
        %p273 = pneg %p272
      $region34: #{decoder_block.7} parent=31 // pred_check_branch
        %275 = sbr.rel (%p273) target = $region36
      $region35: #{decoder_block.7} parent=31 // pred_region
        %vm276 = vcmask 7168
        %277 = vst.msk [vmem:[#allocation2] sm:$0xff] %vm276, -inf
        %278 = vst.msk [vmem:[#allocation2 + $0x8] sm:$0xff] %vm276, -inf
        %279 = vst.msk [vmem:[#allocation3] sm:$0xff] %vm276, 0.0
        %280 = vst.msk [vmem:[#allocation3 + $0x8] sm:$0xff] %vm276, 0.0
        %vm281 = vcmask 130048
        %282 = vst.msk [vmem:[#allocation4] sm:$0xff] %vm281, 0.0
        %283 = vst.msk [vmem:[#allocation4 + $0x8] sm:$0xff] %vm281, 0.0
      $region36: #{decoder_block.7} parent=31 // pred_fallthru
        _
      %v284 = vld [vmem:[%s246] sm:$0xff]
      %v285 = vld [vmem:[%s246 + $0x8] sm:$0xff]
      %v286 = vmul.f32 %v284, 0.35355338
      %v287 = vmul.f32 %v285, 0.35355338
      %v288 = vpack.c.bf16 %v286, %v286
      %v289 = vpack.c.bf16 %v287, %v287
      %v290 = vld [vmem:[%s254] sm:$0xff]
      %v291 = vld [vmem:[%s254 + $0x8] sm:$0xff]
      %v292 = vpack.c.bf16 %v290, %v290
      %v293 = vpack.c.bf16 %v291, %v291
      %v294 = vld [vmem:[%s262] sm:$0xff]
      %v295 = vld [vmem:[%s262 + $0x8] sm:$0xff]
      %v296 = vpack.c.bf16 %v294, %v294
      %v297 = vpack.c.bf16 %v295, %v295
      %vm298 = vcmask 130048
      %v300 = vsel %vm298, %v288, 0
      %v303 = vsel %vm298, %v292, 0
      %305 = vmatprep.subr.bf16.mxu0 0
      %306 = vmatpush1.bf16.xpose.msra.mxu0 %v303
      %307 = vmatprep.subr.bf16.mxu0 0
      %308 = vmatpush1.bf16.xpose.msra.mxu0 0
      %309 = vmatprep.subr.bf16.mxu0 0
      %310 = vmatpush1.bf16.xpose.msra.mxu0 0
      %311 = vmatprep.subr.bf16.mxu0 0
      %312 = vmatpush1.bf16.xpose.msra.mxu0 0
      %313 = vmatprep.subr.bf16.mxu0 0
      %314 = vmatpush1.bf16.xpose.msra.mxu0 0
      %315 = vmatprep.subr.bf16.mxu0 0
      %316 = vmatpush1.bf16.xpose.msra.mxu0 0
      %317 = vmatprep.subr.bf16.mxu0 0
      %318 = vmatpush1.bf16.xpose.msra.mxu0 0
      %319 = vmatprep.subr.bf16.mxu0 0
      %320 = vmatpush1.bf16.xpose.msra.mxu0 0
      %321 = vmatprep.subr.bf16.mxu0 0
      %322 = vmatpush1.bf16.xpose.msra.mxu0 0
      %323 = vmatprep.subr.bf16.mxu0 0
      %324 = vmatpush1.bf16.xpose.msra.mxu0 0
      %325 = vmatprep.subr.bf16.mxu0 0
      %326 = vmatpush1.bf16.xpose.msra.mxu0 0
      %327 = vmatprep.subr.bf16.mxu0 0
      %328 = vmatpush1.bf16.xpose.msra.mxu0 0
      %329 = vmatprep.subr.bf16.mxu0 0
      %330 = vmatpush1.bf16.xpose.msra.mxu0 0
      %331 = vmatprep.subr.bf16.mxu0 0
      %332 = vmatpush1.bf16.xpose.msra.mxu0 0
      %333 = vmatprep.subr.bf16.mxu0 0
      %334 = vmatpush1.bf16.xpose.msra.mxu0 0
      %335 = vmatprep.subr.bf16.mxu0 0
      %336 = vmatpush1.bf16.xpose.msra.mxu0 0
      %337 = vmatprep.mubr.bf16.mxu0 0
      %338 = vmatmul.mubr.bf16.gmra.mrb[0].mxu0 %v300
      %v339 = vpop.f32.mrb[0].mxu0
      %v340 = vadd.f32 0.0, %v339
      %v341 = vpop.f32.mrb[0].mxu0
      %v342 = vpop.f32.mrb[0].mxu0
      %v343 = vpop.f32.mrb[0].mxu0
      %344 = vdwg.mxu0
      %v346 = vsel %vm298, %v289, 0
      %v349 = vsel %vm298, %v293, 0
      %351 = vmatprep.subr.bf16.mxu0 0
      %352 = vmatpush1.bf16.xpose.msra.mxu0 %v349
      %353 = vmatprep.subr.bf16.mxu0 0
      %354 = vmatpush1.bf16.xpose.msra.mxu0 0
      %355 = vmatprep.subr.bf16.mxu0 0
      %356 = vmatpush1.bf16.xpose.msra.mxu0 0
      %357 = vmatprep.subr.bf16.mxu0 0
      %358 = vmatpush1.bf16.xpose.msra.mxu0 0
      %359 = vmatprep.subr.bf16.mxu0 0
      %360 = vmatpush1.bf16.xpose.msra.mxu0 0
      %361 = vmatprep.subr.bf16.mxu0 0
      %362 = vmatpush1.bf16.xpose.msra.mxu0 0
      %363 = vmatprep.subr.bf16.mxu0 0
      %364 = vmatpush1.bf16.xpose.msra.mxu0 0
      %365 = vmatprep.subr.bf16.mxu0 0
      %366 = vmatpush1.bf16.xpose.msra.mxu0 0
      %367 = vmatprep.subr.bf16.mxu0 0
      %368 = vmatpush1.bf16.xpose.msra.mxu0 0
      %369 = vmatprep.subr.bf16.mxu0 0
      %370 = vmatpush1.bf16.xpose.msra.mxu0 0
      %371 = vmatprep.subr.bf16.mxu0 0
      %372 = vmatpush1.bf16.xpose.msra.mxu0 0
      %373 = vmatprep.subr.bf16.mxu0 0
      %374 = vmatpush1.bf16.xpose.msra.mxu0 0
      %375 = vmatprep.subr.bf16.mxu0 0
      %376 = vmatpush1.bf16.xpose.msra.mxu0 0
      %377 = vmatprep.subr.bf16.mxu0 0
      %378 = vmatpush1.bf16.xpose.msra.mxu0 0
      %379 = vmatprep.subr.bf16.mxu0 0
      %380 = vmatpush1.bf16.xpose.msra.mxu0 0
      %381 = vmatprep.subr.bf16.mxu0 0
      %382 = vmatpush1.bf16.xpose.msra.mxu0 0
      %383 = vmatprep.mubr.bf16.mxu0 0
      %384 = vmatmul.mubr.bf16.gmra.mrb[0].mxu0 %v346
      %v385 = vpop.f32.mrb[0].mxu0
      %v386 = vadd.f32 0.0, %v385
      %v387 = vpop.f32.mrb[0].mxu0
      %v388 = vpop.f32.mrb[0].mxu0
      %v389 = vpop.f32.mrb[0].mxu0
      %390 = vdwg.mxu0
      %v391 = vld [vmem:[#allocation2] sm:$0xff]
      %v392 = vld [vmem:[#allocation2 + $0x8] sm:$0xff]
      %vm393 = vcmask 64512
      %v394 = vsel %vm393, %v340, -inf
      %395 = vmax.xlane.f32.xlu0 %v394
      %v396 = vpop.xlane.xlu0 %395
      %v397 = vsel %vm393, %v386, -inf
      %398 = vmax.xlane.f32.xlu0 %v397
      %v399 = vpop.xlane.xlu0 %398
      %v400 = vmax.f32 %v391, %v396
      %v401 = vmax.f32 %v392, %v399
      %v402 = vsub.f32 %v391, %v400
      %v403 = vsub.f32 %v392, %v401
      %v404 = vmul.f32 %v402, 1.442695
      %v405 = vpow.pop %v404
      %v406 = vmul.f32 %v403, 1.442695
      %v407 = vpow.pop %v406
      %409 = vset.pattern.permute.xlu0 0
      %410 = vperm.xlu0 %409, %v400
      %v411 = vpop.permute.xlu0 %410
      %414 = vset.pattern.permute.xlu0 0
      %415 = vperm.xlu0 %414, %v401
      %v416 = vpop.permute.xlu0 %415
      %v418 = vsub.f32 %v340, %v411
      %v419 = vsub.f32 %v386, %v416
      %v420 = vmul.f32 %v418, 1.442695
      %v421 = vpow.pop %v420
      %v422 = vmul.f32 %v419, 1.442695
      %v423 = vpow.pop %v422
      %v424 = vld [vmem:[#allocation3] sm:$0xff]
      %v425 = vld [vmem:[#allocation3 + $0x8] sm:$0xff]
      %v426 = vmul.f32 %v405, %v424
      %v427 = vmul.f32 %v407, %v425
      %v428 = vsel %vm393, %v421, 0.0
      %429 = vadd.xlane.f32.xlu0 %v428
      %v430 = vpop.xlane.xlu0 %429
      %v431 = vsel %vm393, %v423, 0.0
      %432 = vadd.xlane.f32.xlu0 %v431
      %v433 = vpop.xlane.xlu0 %432
      %v434 = vadd.f32 %v426, %v430
      %v435 = vadd.f32 %v427, %v433
      %vm436 = vcmask 7168
      %437 = vst.msk [vmem:[#allocation3] sm:$0xff] %vm436, %v434
      %438 = vst.msk [vmem:[#allocation3 + $0x8] sm:$0xff] %vm436, %v435
      %v439 = vld [vmem:[#allocation4] sm:$0xff]
      %v440 = vld [vmem:[#allocation4 + $0x8] sm:$0xff]
      %442 = vset.pattern.permute.xlu0 0
      %443 = vperm.xlu0 %442, %v405
      %v444 = vpop.permute.xlu0 %443
      %447 = vset.pattern.permute.xlu0 0
      %448 = vperm.xlu0 %447, %v407
      %v449 = vpop.permute.xlu0 %448
      %v451 = vmul.f32 %v444, %v439
      %v452 = vmul.f32 %v449, %v440
      %v453 = vpack.c.bf16 %v421, %v421
      %v454 = vpack.c.bf16 %v423, %v423
      %v456 = vsel %vm393, %v453, 0
      %vm458 = vcmask 1043456
      %v460 = vsel %vm458, %v296, 0
      %462 = vmatprep.subr.bf16.mxu0 0
      %463 = vmatpush1.bf16.msra.mxu0 %v460
      %464 = vmatprep.subr.bf16.mxu0 0
      %465 = vmatpush1.bf16.msra.mxu0 0
      %466 = vmatprep.subr.bf16.mxu0 0
      %467 = vmatpush1.bf16.msra.mxu0 0
      %468 = vmatprep.subr.bf16.mxu0 0
      %469 = vmatpush1.bf16.msra.mxu0 0
      %470 = vmatprep.subr.bf16.mxu0 0
      %471 = vmatpush1.bf16.msra.mxu0 0
      %472 = vmatprep.subr.bf16.mxu0 0
      %473 = vmatpush1.bf16.msra.mxu0 0
      %474 = vmatprep.subr.bf16.mxu0 0
      %475 = vmatpush1.bf16.msra.mxu0 0
      %476 = vmatprep.subr.bf16.mxu0 0
      %477 = vmatpush1.bf16.msra.mxu0 0
      %478 = vmatprep.subr.bf16.mxu0 0
      %479 = vmatpush1.bf16.msra.mxu0 0
      %480 = vmatprep.subr.bf16.mxu0 0
      %481 = vmatpush1.bf16.msra.mxu0 0
      %482 = vmatprep.subr.bf16.mxu0 0
      %483 = vmatpush1.bf16.msra.mxu0 0
      %484 = vmatprep.subr.bf16.mxu0 0
      %485 = vmatpush1.bf16.msra.mxu0 0
      %486 = vmatprep.subr.bf16.mxu0 0
      %487 = vmatpush1.bf16.msra.mxu0 0
      %488 = vmatprep.subr.bf16.mxu0 0
      %489 = vmatpush1.bf16.msra.mxu0 0
      %490 = vmatprep.subr.bf16.mxu0 0
      %491 = vmatpush1.bf16.msra.mxu0 0
      %492 = vmatprep.subr.bf16.mxu0 0
      %493 = vmatpush1.bf16.msra.mxu0 0
      %494 = vmatprep.mubr.bf16.mxu0 0
      %495 = vmatmul.mubr.bf16.gmra.mrb[0].mxu0 %v456
      %v496 = vpop.f32.mrb[0].mxu0
      %v497 = vadd.f32 0.0, %v496
      %v498 = vpop.f32.mrb[0].mxu0
      %v499 = vpop.f32.mrb[0].mxu0
      %v500 = vpop.f32.mrb[0].mxu0
      %501 = vdwg.mxu0
      %v503 = vsel %vm393, %v454, 0
      %v506 = vsel %vm458, %v297, 0
      %508 = vmatprep.subr.bf16.mxu0 0
      %509 = vmatpush1.bf16.msra.mxu0 %v506
      %510 = vmatprep.subr.bf16.mxu0 0
      %511 = vmatpush1.bf16.msra.mxu0 0
      %512 = vmatprep.subr.bf16.mxu0 0
      %513 = vmatpush1.bf16.msra.mxu0 0
      %514 = vmatprep.subr.bf16.mxu0 0
      %515 = vmatpush1.bf16.msra.mxu0 0
      %516 = vmatprep.subr.bf16.mxu0 0
      %517 = vmatpush1.bf16.msra.mxu0 0
      %518 = vmatprep.subr.bf16.mxu0 0
      %519 = vmatpush1.bf16.msra.mxu0 0
      %520 = vmatprep.subr.bf16.mxu0 0
      %521 = vmatpush1.bf16.msra.mxu0 0
      %522 = vmatprep.subr.bf16.mxu0 0
      %523 = vmatpush1.bf16.msra.mxu0 0
      %524 = vmatprep.subr.bf16.mxu0 0
      %525 = vmatpush1.bf16.msra.mxu0 0
      %526 = vmatprep.subr.bf16.mxu0 0
      %527 = vmatpush1.bf16.msra.mxu0 0
      %528 = vmatprep.subr.bf16.mxu0 0
      %529 = vmatpush1.bf16.msra.mxu0 0
      %530 = vmatprep.subr.bf16.mxu0 0
      %531 = vmatpush1.bf16.msra.mxu0 0
      %532 = vmatprep.subr.bf16.mxu0 0
      %533 = vmatpush1.bf16.msra.mxu0 0
      %534 = vmatprep.subr.bf16.mxu0 0
      %535 = vmatpush1.bf16.msra.mxu0 0
      %536 = vmatprep.subr.bf16.mxu0 0
      %537 = vmatpush1.bf16.msra.mxu0 0
      %538 = vmatprep.subr.bf16.mxu0 0
      %539 = vmatpush1.bf16.msra.mxu0 0
      %540 = vmatprep.mubr.bf16.mxu0 0
      %541 = vmatmul.mubr.bf16.gmra.mrb[0].mxu0 %v503
      %v542 = vpop.f32.mrb[0].mxu0
      %v543 = vadd.f32 0.0, %v542
      %v544 = vpop.f32.mrb[0].mxu0
      %v545 = vpop.f32.mrb[0].mxu0
      %v546 = vpop.f32.mrb[0].mxu0
      %547 = vdwg.mxu0
      %v548 = vadd.f32 %v451, %v497
      %v549 = vadd.f32 %v452, %v543
      %550 = vst.msk [vmem:[#allocation4] sm:$0xff] %vm298, %v548
      %551 = vst.msk [vmem:[#allocation4 + $0x8] sm:$0xff] %vm298, %v549
      %552 = vst.msk [vmem:[#allocation2] sm:$0xff] %vm436, %v400
      %553 = vst.msk [vmem:[#allocation2 + $0x8] sm:$0xff] %vm436, %v401
      // Predicated region
      $region37: #{decoder_block.7} parent=31 // pred_check
        %p554 = pneg %p272
      $region38: #{decoder_block.7} parent=31 // pred_check_branch
        %556 = sbr.rel (%p554) target = $region40
      $region39: #{decoder_block.7} parent=31 // pred_region
        %v557 = vld [vmem:[#allocation4] sm:$0xff]
        %v558 = vld [vmem:[#allocation4 + $0x8] sm:$0xff]
        %v559 = vld [vmem:[#allocation3] sm:$0xff]
        %v560 = vld [vmem:[#allocation3 + $0x8] sm:$0xff]
        %562 = vset.pattern.permute.xlu0 0
        %563 = vperm.xlu0 %562, %v559
        %v564 = vpop.permute.xlu0 %563
        %567 = vset.pattern.permute.xlu0 0
        %568 = vperm.xlu0 %567, %v560
        %v569 = vpop.permute.xlu0 %568
        %v571 = vrcp.pop %v564
        %v572 = vmul.f32 %v557, %v571
        %v573 = vrcp.pop %v569
        %v574 = vmul.f32 %v558, %v573
        %575 = vst.msk [vmem:[%s270] sm:$0xff] %vm298, %v572
        %576 = vst.msk [vmem:[%s270 + $0x8] sm:$0xff] %vm298, %v574
      $region40: #{decoder_block.7} parent=31 // pred_fallthru
        _
      %p577 = scmp.lt.s32.totalorder %s19, 1
      %s578 = scalar_select %p577, %s19, 1
      %p579 = scmp.lt.s32.totalorder %s20, 0
      %s580 = scalar_select %p579, %s20, 0
      %s581 = smul.addr %s578, 2
      %s582 = sadd.s32 %s580, %s581
      %s583 = smul.addr %s582, 8
      %s584 = scalar_lea.vmem %s3, %s583
      // Predicated region
      $region41: #{decoder_block.7} parent=31 // pred_check
        %p585 = pneg %p137
      $region42: #{decoder_block.7} parent=31 // pred_check_branch
        %587 = sbr.rel (%p585) target = $region44
      $region43: #{decoder_block.7} parent=31 // pred_region
        _
      $region44: #{decoder_block.7} parent=31 // pred_fallthru
        _
    $region32: #{decoder_block.7} parent=5 // pred_fallthru
      _
    %p588 = scmp.le.s32.totalorder 2, %s9
    // Predicated region
    $region45: #{decoder_block.7} parent=5 // pred_check
      %p589 = pneg %p588
    $region46: #{decoder_block.7} parent=5 // pred_check_branch
      %591 = sbr.rel (%p589) target = $region48
    $region47: #{decoder_block.7} parent=5 // pred_region
      %s592 = ssub.s32 %s9, 2
      // Predicated region
      $region49: #{decoder_block.7} parent=47 // pred_check
        %p593 = pneg %p143
      $region50: #{decoder_block.7} parent=47 // pred_check_branch
        %595 = sbr.rel (%p593) target = $region52
      $region51: #{decoder_block.7} parent=47 // pred_region
        %p596 = scmp.lt.s32.totalorder %s22, 1
        %s597 = scalar_select %p596, %s22, 1
        %p598 = scmp.lt.s32.totalorder %s23, 0
        %s599 = scalar_select %p598, %s23, 0
        %s600 = smul.addr %s597, 2
        %s601 = sadd.s32 %s599, %s600
        %s602 = smul.addr %s601, 8
        %s603 = scalar_lea.vmem %s3, %s602
      $region52: #{decoder_block.7} parent=47 // pred_fallthru
        _
    $region48: #{decoder_block.7} parent=5 // pred_fallthru
      _
  $region6: #{decoder_block.7} parent=0 // loop_footer
    %s13 = sadd.s32 1, %s9
  $region7: #{decoder_block.7} parent=0 // loop_footer_branch
    %8 = sbr.rel target = $region3
  $region8: #{decoder_block.7} parent=0 // loop_exit
    _

// kernel: decoder_block.8
$region0: #{decoder_block.8}
  #allocation0 [shape = 'u32[]', space=smem, size = 0x4, offset = 0x4, fixed_abs, tag = 'smem constant byte address 0x4 - core index']
  #allocation1 [shape = 'u32[144,128]{1,0:T(1,128)}', space=vmem, size = 0x12000, scoped, tag = 'internal scratch']
  %s0 = inlined_call_operand.vmem [shape: f32[16,32], index: 0, kind: input, shape index: {}]
  %s1 = inlined_call_operand.vmem [shape: f32[16,32], index: 1, kind: input, shape index: {}]
  %s2 = inlined_call_operand.vmem [shape: f32[1,32], index: 2, kind: input, shape index: {}]
  %s3 = inlined_call_operand.vmem [shape: f32[1,32], index: 3, kind: input, shape index: {}]
  %s4 = inlined_call_operand.vmem [shape: bf16[32,32], index: 4, kind: input, shape index: {}]
  %s5 = inlined_call_operand.vmem [shape: f32[1,32], index: 5, kind: input, shape index: {}]
  %s6 = inlined_call_operand.vmem [shape: f32[16,32], index: 6, kind: output, shape index: {0}]
  %s7 = inlined_call_operand.vmem [shape: f32[16,32], index: 7, kind: output, shape index: {1}]
  %8 = xla_tuple %s6, %s7
  %s9 = sld [smem:[#allocation0]]
  $region42: #{decoder_block.8} parent=0
    _
  %s11 = ssub.s32 1, %s9
  %s12 = scalar_select 0, %s11, %s9
  // Predicated region
  $region2: #{decoder_block.8} parent=0 // pred_check
    _
  $region3: #{decoder_block.8} parent=0 // pred_check_branch
    %14 = sbr.rel (0) target = $region5
  $region4: #{decoder_block.8} parent=0 // pred_region
    _
  $region5: #{decoder_block.8} parent=0 // pred_fallthru
    _
  // Predicated region
  $region6: #{decoder_block.8} parent=0 // pred_check
    _
  $region7: #{decoder_block.8} parent=0 // pred_check_branch
    %16 = sbr.rel (0) target = $region9
  $region8: #{decoder_block.8} parent=0 // pred_region
    _
  $region9: #{decoder_block.8} parent=0 // pred_fallthru
    _
  // Predicated region
  $region10: #{decoder_block.8} parent=0 // pred_check
    _
  $region11: #{decoder_block.8} parent=0 // pred_check_branch
    %18 = sbr.rel (0) target = $region13
  $region12: #{decoder_block.8} parent=0 // pred_region
    _
  $region13: #{decoder_block.8} parent=0 // pred_fallthru
    _
  // Predicated region
  $region14: #{decoder_block.8} parent=0 // pred_check
    _
  $region15: #{decoder_block.8} parent=0 // pred_check_branch
    %20 = sbr.rel (0) target = $region17
  $region16: #{decoder_block.8} parent=0 // pred_region
    _
  $region17: #{decoder_block.8} parent=0 // pred_fallthru
    _
  // Predicated region
  $region18: #{decoder_block.8} parent=0 // pred_check
    _
  $region19: #{decoder_block.8} parent=0 // pred_check_branch
    %22 = sbr.rel (0) target = $region21
  $region20: #{decoder_block.8} parent=0 // pred_region
    _
  $region21: #{decoder_block.8} parent=0 // pred_fallthru
    _
  // Predicated region
  $region22: #{decoder_block.8} parent=0 // pred_check
    _
  $region23: #{decoder_block.8} parent=0 // pred_check_branch
    %24 = sbr.rel (0) target = $region25
  $region24: #{decoder_block.8} parent=0 // pred_region
    _
  $region25: #{decoder_block.8} parent=0 // pred_fallthru
    _
  %v26 = vld [vmem:[%s0] sm:$0xff]
  %v27 = vld [vmem:[%s0 + $0x8] sm:$0xff]
  %v28 = vld [vmem:[%s1] sm:$0xff]
  %v29 = vld [vmem:[%s1 + $0x8] sm:$0xff]
  %v30 = vadd.f32 %v26, %v28
  %v31 = vadd.f32 %v27, %v29
  %vm32 = vcmask 261120
  %v33 = vsel %vm32, %v30, 0.0
  %34 = vadd.xlane.f32.xlu0 %v33
  %v35 = vpop.xlane.xlu0 %34
  %v36 = vsel %vm32, %v31, 0.0
  %37 = vadd.xlane.f32.xlu0 %v36
  %v38 = vpop.xlane.xlu0 %37
  %v39 = vrcp.pop 32.0
  %v40 = vmul.f32 %v35, %v39
  %v41 = vmul.f32 %v38, %v39
  %v42 = vsub.f32 %v30, %v40
  %v43 = vsub.f32 %v31, %v41
  %v44 = vmul.f32 %v42, %v42
  %v45 = vmul.f32 %v43, %v43
  %v46 = vsel %vm32, %v44, 0.0
  %47 = vadd.xlane.f32.xlu0 %v46
  %v48 = vpop.xlane.xlu0 %47
  %v49 = vsel %vm32, %v45, 0.0
  %50 = vadd.xlane.f32.xlu0 %v49
  %v51 = vpop.xlane.xlu0 %50
  %v52 = vmul.f32 %v48, %v39
  %v53 = vmul.f32 %v51, %v39
  %v54 = vadd.f32 %v52, 1e-05
  %v55 = vadd.f32 %v53, 1e-05
  %v56 = vrsqrt.pop %v54
  %v57 = vrsqrt.pop %v55
  %v58 = vmul.f32 %v42, %v56
  %v59 = vmul.f32 %v43, %v57
  %v60 = vld [vmem:[%s2] sm:$0x1]
  %v62 = vlaneseq
  %v63 = vshrl.u32 %v62, 7
  %v64 = vsub.s32 0, %v63
  %v65 = vrot.slane %v60, %v64
  %v67 = vmul.f32 %v58, %v65
  %v68 = vmul.f32 %v59, %v65
  %v69 = vld [vmem:[%s3] sm:$0x1]
  %v71 = vlaneseq
  %v72 = vshrl.u32 %v71, 7
  %v73 = vsub.s32 0, %v72
  %v74 = vrot.slane %v69, %v73
  %v76 = vadd.f32 %v67, %v74
  %v77 = vadd.f32 %v68, %v74
  %78 = vst.msk [vmem:[%s6] sm:$0xff] %vm32, %v76
  %79 = vst.msk [vmem:[%s6 + $0x8] sm:$0xff] %vm32, %v77
  %v80 = vpack.c.bf16 %v77, %v76
  %v81 = vld [vmem:[%s4] sm:$0xf]
  %v82 = vld [vmem:[%s4 + $0x4] sm:$0xf]
  %v83 = vld [vmem:[%s4 + $0x8] sm:$0xf]
  %v84 = vld [vmem:[%s4 + $0xc] sm:$0xf]
  %v85 = vld [vmem:[%s5] sm:$0x1]
  %v87 = vlaneseq
  %v88 = vshrl.u32 %v87, 7
  %v89 = vsub.s32 0, %v88
  %v90 = vrot.slane %v85, %v89
  %v96 = vunpack.c.l.b16 %v81
  %v97 = vunpack.c.l.b16 %v82
  %v98 = vunpack.c.l.b16 %v83
  %v99 = vunpack.c.l.b16 %v84
  %v100 = vpack.c.b16 %v97, %v96
  %v101 = vpack.c.b16 %v99, %v98
  %v103 = vsel %vm32, %v80, 0
  %v106 = vsel %vm32, %v100, 0
  %v109 = vsel %vm32, %v101, 0
  %111 = vmatprep.subr.bf16.mxu0 0
  %112 = vmatpush1.bf16.xpose.msra.mxu0 %v106
  %113 = vmatprep.subr.bf16.mxu0 0
  %114 = vmatpush1.bf16.xpose.msra.mxu0 %v109
  %115 = vmatprep.subr.bf16.mxu0 0
  %116 = vmatpush1.bf16.xpose.msra.mxu0 0
  %117 = vmatprep.subr.bf16.mxu0 0
  %118 = vmatpush1.bf16.xpose.msra.mxu0 0
  %119 = vmatprep.subr.bf16.mxu0 0
  %120 = vmatpush1.bf16.xpose.msra.mxu0 0
  %121 = vmatprep.subr.bf16.mxu0 0
  %122 = vmatpush1.bf16.xpose.msra.mxu0 0
  %123 = vmatprep.subr.bf16.mxu0 0
  %124 = vmatpush1.bf16.xpose.msra.mxu0 0
  %125 = vmatprep.subr.bf16.mxu0 0
  %126 = vmatpush1.bf16.xpose.msra.mxu0 0
  %127 = vmatprep.subr.bf16.mxu0 0
  %128 = vmatpush1.bf16.xpose.msra.mxu0 0
  %129 = vmatprep.subr.bf16.mxu0 0
  %130 = vmatpush1.bf16.xpose.msra.mxu0 0
  %131 = vmatprep.subr.bf16.mxu0 0
  %132 = vmatpush1.bf16.xpose.msra.mxu0 0
  %133 = vmatprep.subr.bf16.mxu0 0
  %134 = vmatpush1.bf16.xpose.msra.mxu0 0
  %135 = vmatprep.subr.bf16.mxu0 0
  %136 = vmatpush1.bf16.xpose.msra.mxu0 0
  %137 = vmatprep.subr.bf16.mxu0 0
  %138 = vmatpush1.bf16.xpose.msra.mxu0 0
  %139 = vmatprep.subr.bf16.mxu0 0
  %140 = vmatpush1.bf16.xpose.msra.mxu0 0
  %141 = vmatprep.subr.bf16.mxu0 0
  %142 = vmatpush1.bf16.xpose.msra.mxu0 0
  %143 = vmatprep.mubr.bf16.mxu0 0
  %144 = vmatmul.mubr.bf16.gmra.mrb[0].mxu0 %v103
  %v145 = vpop.f32.mrb[0].mxu0
  %v146 = vadd.f32 %v90, %v145
  %v147 = vpop.f32.mrb[0].mxu0
  %v148 = vpop.f32.mrb[0].mxu0
  %v149 = vadd.f32 %v90, %v148
  %v150 = vpop.f32.mrb[0].mxu0
  %151 = vdwg.mxu0
  %152 = vst.msk [vmem:[%s7] sm:$0xff] %vm32, %v146
  %153 = vst.msk [vmem:[%s7 + $0x8] sm:$0xff] %vm32, %v149
  // Predicated region
  $region26: #{decoder_block.8} parent=0 // pred_check
    _
  $region27: #{decoder_block.8} parent=0 // pred_check_branch
    %155 = sbr.rel (0) target = $region29
  $region28: #{decoder_block.8} parent=0 // pred_region
    _
  $region29: #{decoder_block.8} parent=0 // pred_fallthru
    _
  // Predicated region
  $region30: #{decoder_block.8} parent=0 // pred_check
    _
  $region31: #{decoder_block.8} parent=0 // pred_check_branch
    %157 = sbr.rel (0) target = $region33
  $region32: #{decoder_block.8} parent=0 // pred_region
    _
  $region33: #{decoder_block.8} parent=0 // pred_fallthru
    _
  // Predicated region
  $region34: #{decoder_block.8} parent=0 // pred_check
    _
  $region35: #{decoder_block.8} parent=0 // pred_check_branch
    %159 = sbr.rel (0) target = $region37
  $region36: #{decoder_block.8} parent=0 // pred_region
    _
  $region37: #{decoder_block.8} parent=0 // pred_fallthru
    _
  // Predicated region
  $region38: #{decoder_block.8} parent=0 // pred_check
    _
  $region39: #{decoder_block.8} parent=0 // pred_check_branch
    %161 = sbr.rel (0) target = $region41
  $region40: #{decoder_block.8} parent=0 // pred_region
    _
  $region41: #{decoder_block.8} parent=0 // pred_fallthru
    _

// kernel: decoder_block.9
$region0: #{decoder_block.9}
  #allocation0 [shape = 'u32[]', space=smem, size = 0x4, offset = 0x4, fixed_abs, tag = 'smem constant byte address 0x4 - core index']
  #allocation1 [shape = 'u32[144,128]{1,0:T(1,128)}', space=vmem, size = 0x12000, scoped, tag = 'internal scratch']
  %s0 = inlined_call_operand.vmem [shape: f32[16,32], index: 0, kind: input, shape index: {}]
  %s1 = inlined_call_operand.vmem [shape: bf16[32,32], index: 1, kind: input, shape index: {}]
  %s2 = inlined_call_operand.vmem [shape: f32[1,32], index: 2, kind: input, shape index: {}]
  %s3 = inlined_call_operand.vmem [shape: bf16[32,32], index: 3, kind: input, shape index: {}]
  %s4 = inlined_call_operand.vmem [shape: f32[1,32], index: 4, kind: input, shape index: {}]
  %s5 = inlined_call_operand.vmem [shape: f32[16,32], index: 5, kind: output, shape index: {0}]
  %s6 = inlined_call_operand.vmem [shape: f32[16,32], index: 6, kind: output, shape index: {1}]
  %7 = xla_tuple %s5, %s6
  %s8 = sld [smem:[#allocation0]]
  $region38: #{decoder_block.9} parent=0
    _
  %s10 = ssub.s32 1, %s8
  %s11 = scalar_select 0, %s10, %s8
  // Predicated region
  $region2: #{decoder_block.9} parent=0 // pred_check
    _
  $region3: #{decoder_block.9} parent=0 // pred_check_branch
    %13 = sbr.rel (0) target = $region5
  $region4: #{decoder_block.9} parent=0 // pred_region
    _
  $region5: #{decoder_block.9} parent=0 // pred_fallthru
    _
  // Predicated region
  $region6: #{decoder_block.9} parent=0 // pred_check
    _
  $region7: #{decoder_block.9} parent=0 // pred_check_branch
    %15 = sbr.rel (0) target = $region9
  $region8: #{decoder_block.9} parent=0 // pred_region
    _
  $region9: #{decoder_block.9} parent=0 // pred_fallthru
    _
  // Predicated region
  $region10: #{decoder_block.9} parent=0 // pred_check
    _
  $region11: #{decoder_block.9} parent=0 // pred_check_branch
    %17 = sbr.rel (0) target = $region13
  $region12: #{decoder_block.9} parent=0 // pred_region
    _
  $region13: #{decoder_block.9} parent=0 // pred_fallthru
    _
  // Predicated region
  $region14: #{decoder_block.9} parent=0 // pred_check
    _
  $region15: #{decoder_block.9} parent=0 // pred_check_branch
    %19 = sbr.rel (0) target = $region17
  $region16: #{decoder_block.9} parent=0 // pred_region
    _
  $region17: #{decoder_block.9} parent=0 // pred_fallthru
    _
  // Predicated region
  $region18: #{decoder_block.9} parent=0 // pred_check
    _
  $region19: #{decoder_block.9} parent=0 // pred_check_branch
    %21 = sbr.rel (0) target = $region21
  $region20: #{decoder_block.9} parent=0 // pred_region
    _
  $region21: #{decoder_block.9} parent=0 // pred_fallthru
    _
  %v23 = vld [vmem:[%s0] sm:$0xff]
  %v24 = vld [vmem:[%s0 + $0x8] sm:$0xff]
  %v25 = vpack.c.bf16 %v24, %v23
  %v26 = vld [vmem:[%s1] sm:$0xf]
  %v27 = vld [vmem:[%s1 + $0x4] sm:$0xf]
  %v28 = vld [vmem:[%s1 + $0x8] sm:$0xf]
  %v29 = vld [vmem:[%s1 + $0xc] sm:$0xf]
  %v30 = vld [vmem:[%s2] sm:$0x1]
  %v32 = vlaneseq
  %v33 = vshrl.u32 %v32, 7
  %v34 = vsub.s32 0, %v33
  %v35 = vrot.slane %v30, %v34
  %v41 = vunpack.c.l.b16 %v26
  %v42 = vunpack.c.l.b16 %v27
  %v43 = vunpack.c.l.b16 %v28
  %v44 = vunpack.c.l.b16 %v29
  %v45 = vpack.c.b16 %v42, %v41
  %v46 = vpack.c.b16 %v44, %v43
  %vm47 = vcmask 261120
  %v49 = vsel %vm47, %v25, 0
  %v52 = vsel %vm47, %v45, 0
  %v55 = vsel %vm47, %v46, 0
  %57 = vmatprep.subr.bf16.mxu0 0
  %58 = vmatpush1.bf16.xpose.msra.mxu0 %v52
  %59 = vmatprep.subr.bf16.mxu0 0
  %60 = vmatpush1.bf16.xpose.msra.mxu0 %v55
  %61 = vmatprep.subr.bf16.mxu0 0
  %62 = vmatpush1.bf16.xpose.msra.mxu0 0
  %63 = vmatprep.subr.bf16.mxu0 0
  %64 = vmatpush1.bf16.xpose.msra.mxu0 0
  %65 = vmatprep.subr.bf16.mxu0 0
  %66 = vmatpush1.bf16.xpose.msra.mxu0 0
  %67 = vmatprep.subr.bf16.mxu0 0
  %68 = vmatpush1.bf16.xpose.msra.mxu0 0
  %69 = vmatprep.subr.bf16.mxu0 0
  %70 = vmatpush1.bf16.xpose.msra.mxu0 0
  %71 = vmatprep.subr.bf16.mxu0 0
  %72 = vmatpush1.bf16.xpose.msra.mxu0 0
  %73 = vmatprep.subr.bf16.mxu0 0
  %74 = vmatpush1.bf16.xpose.msra.mxu0 0
  %75 = vmatprep.subr.bf16.mxu0 0
  %76 = vmatpush1.bf16.xpose.msra.mxu0 0
  %77 = vmatprep.subr.bf16.mxu0 0
  %78 = vmatpush1.bf16.xpose.msra.mxu0 0
  %79 = vmatprep.subr.bf16.mxu0 0
  %80 = vmatpush1.bf16.xpose.msra.mxu0 0
  %81 = vmatprep.subr.bf16.mxu0 0
  %82 = vmatpush1.bf16.xpose.msra.mxu0 0
  %83 = vmatprep.subr.bf16.mxu0 0
  %84 = vmatpush1.bf16.xpose.msra.mxu0 0
  %85 = vmatprep.subr.bf16.mxu0 0
  %86 = vmatpush1.bf16.xpose.msra.mxu0 0
  %87 = vmatprep.subr.bf16.mxu0 0
  %88 = vmatpush1.bf16.xpose.msra.mxu0 0
  %89 = vmatprep.mubr.bf16.mxu0 0
  %90 = vmatmul.mubr.bf16.gmra.mrb[0].mxu0 %v49
  %v91 = vpop.f32.mrb[0].mxu0
  %v92 = vadd.f32 %v35, %v91
  %v93 = vpop.f32.mrb[0].mxu0
  %v94 = vpop.f32.mrb[0].mxu0
  %v95 = vadd.f32 %v35, %v94
  %v96 = vpop.f32.mrb[0].mxu0
  %97 = vdwg.mxu0
  %98 = vst.msk [vmem:[%s5] sm:$0xff] %vm47, %v92
  %99 = vst.msk [vmem:[%s5 + $0x8] sm:$0xff] %vm47, %v95
  %v100 = vld [vmem:[%s3] sm:$0xf]
  %v101 = vld [vmem:[%s3 + $0x4] sm:$0xf]
  %v102 = vld [vmem:[%s3 + $0x8] sm:$0xf]
  %v103 = vld [vmem:[%s3 + $0xc] sm:$0xf]
  %v104 = vld [vmem:[%s4] sm:$0x1]
  %v106 = vlaneseq
  %v107 = vshrl.u32 %v106, 7
  %v108 = vsub.s32 0, %v107
  %v109 = vrot.slane %v104, %v108
  %v115 = vunpack.c.l.b16 %v100
  %v116 = vunpack.c.l.b16 %v101
  %v117 = vunpack.c.l.b16 %v102
  %v118 = vunpack.c.l.b16 %v103
  %v119 = vpack.c.b16 %v116, %v115
  %v120 = vpack.c.b16 %v118, %v117
  %v122 = vsel %vm47, %v119, 0
  %v125 = vsel %vm47, %v120, 0
  %127 = vmatprep.subr.bf16.mxu0 0
  %128 = vmatpush1.bf16.xpose.msra.mxu0 %v122
  %129 = vmatprep.subr.bf16.mxu0 0
  %130 = vmatpush1.bf16.xpose.msra.mxu0 %v125
  %131 = vmatprep.subr.bf16.mxu0 0
  %132 = vmatpush1.bf16.xpose.msra.mxu0 0
  %133 = vmatprep.subr.bf16.mxu0 0
  %134 = vmatpush1.bf16.xpose.msra.mxu0 0
  %135 = vmatprep.subr.bf16.mxu0 0
  %136 = vmatpush1.bf16.xpose.msra.mxu0 0
  %137 = vmatprep.subr.bf16.mxu0 0
  %138 = vmatpush1.bf16.xpose.msra.mxu0 0
  %139 = vmatprep.subr.bf16.mxu0 0
  %140 = vmatpush1.bf16.xpose.msra.mxu0 0
  %141 = vmatprep.subr.bf16.mxu0 0
  %142 = vmatpush1.bf16.xpose.msra.mxu0 0
  %143 = vmatprep.subr.bf16.mxu0 0
  %144 = vmatpush1.bf16.xpose.msra.mxu0 0
  %145 = vmatprep.subr.bf16.mxu0 0
  %146 = vmatpush1.bf16.xpose.msra.mxu0 0
  %147 = vmatprep.subr.bf16.mxu0 0
  %148 = vmatpush1.bf16.xpose.msra.mxu0 0
  %149 = vmatprep.subr.bf16.mxu0 0
  %150 = vmatpush1.bf16.xpose.msra.mxu0 0
  %151 = vmatprep.subr.bf16.mxu0 0
  %152 = vmatpush1.bf16.xpose.msra.mxu0 0
  %153 = vmatprep.subr.bf16.mxu0 0
  %154 = vmatpush1.bf16.xpose.msra.mxu0 0
  %155 = vmatprep.subr.bf16.mxu0 0
  %156 = vmatpush1.bf16.xpose.msra.mxu0 0
  %157 = vmatprep.subr.bf16.mxu0 0
  %158 = vmatpush1.bf16.xpose.msra.mxu0 0
  %159 = vmatprep.mubr.bf16.mxu0 0
  %160 = vmatmul.mubr.bf16.gmra.mrb[0].mxu0 %v49
  %v161 = vpop.f32.mrb[0].mxu0
  %v162 = vadd.f32 %v109, %v161
  %v163 = vpop.f32.mrb[0].mxu0
  %v164 = vpop.f32.mrb[0].mxu0
  %v165 = vadd.f32 %v109, %v164
  %v166 = vpop.f32.mrb[0].mxu0
  %167 = vdwg.mxu0
  %168 = vst.msk [vmem:[%s6] sm:$0xff] %vm47, %v162
  %169 = vst.msk [vmem:[%s6 + $0x8] sm:$0xff] %vm47, %v165
  // Predicated region
  $region22: #{decoder_block.9} parent=0 // pred_check
    _
  $region23: #{decoder_block.9} parent=0 // pred_check_branch
    %171 = sbr.rel (0) target = $region25
  $region24: #{decoder_block.9} parent=0 // pred_region
    _
  $region25: #{decoder_block.9} parent=0 // pred_fallthru
    _
  // Predicated region
  $region26: #{decoder_block.9} parent=0 // pred_check
    _
  $region27: #{decoder_block.9} parent=0 // pred_check_branch
    %173 = sbr.rel (0) target = $region29
  $region28: #{decoder_block.9} parent=0 // pred_region
    _
  $region29: #{decoder_block.9} parent=0 // pred_fallthru
    _
  // Predicated region
  $region30: #{decoder_block.9} parent=0 // pred_check
    _
  $region31: #{decoder_block.9} parent=0 // pred_check_branch
    %175 = sbr.rel (0) target = $region33
  $region32: #{decoder_block.9} parent=0 // pred_region
    _
  $region33: #{decoder_block.9} parent=0 // pred_fallthru
    _
  // Predicated region
  $region34: #{decoder_block.9} parent=0 // pred_check
    _
  $region35: #{decoder_block.9} parent=0 // pred_check_branch
    %177 = sbr.rel (0) target = $region37
  $region36: #{decoder_block.9} parent=0 // pred_region
    _
  $region37: #{decoder_block.9} parent=0 // pred_fallthru
    _

// kernel: decoder_block.11
$region0: #{decoder_block.11}
  #allocation0 [shape = 'u32[]', space=smem, size = 0x4, offset = 0x4, fixed_abs, tag = 'smem constant byte address 0x4 - core index']
  #allocation1 [shape = 'u32[144,128]{1,0:T(1,128)}', space=vmem, size = 0x12000, scoped, tag = 'internal scratch']
  %s0 = inlined_call_operand.vmem [shape: f32[16,32], index: 0, kind: input, shape index: {}]
  %s1 = inlined_call_operand.vmem [shape: f32[16,32], index: 1, kind: input, shape index: {}]
  %s2 = inlined_call_operand.vmem [shape: f32[1,32], index: 2, kind: input, shape index: {}]
  %s3 = inlined_call_operand.vmem [shape: f32[1,32], index: 3, kind: input, shape index: {}]
  %s4 = inlined_call_operand.vmem [shape: bf16[64,32], index: 4, kind: input, shape index: {}]
  %s5 = inlined_call_operand.vmem [shape: f32[1,64], index: 5, kind: input, shape index: {}]
  %s6 = inlined_call_operand.vmem [shape: bf16[32,64], index: 6, kind: input, shape index: {}]
  %s7 = inlined_call_operand.vmem [shape: f32[1,32], index: 7, kind: input, shape index: {}]
  %s8 = inlined_call_operand.vmem [shape: f32[1,32], index: 8, kind: input, shape index: {}]
  %s9 = inlined_call_operand.vmem [shape: f32[1,32], index: 9, kind: input, shape index: {}]
  %s10 = inlined_call_operand.hbm [shape: f32[16,32], index: 10, kind: output, shape index: {}]
  %s11 = sld [smem:[#allocation0]]
  $region50: #{decoder_block.11} parent=0
    _
  %s13 = ssub.s32 1, %s11
  %s14 = scalar_select 0, %s13, %s11
  $region1: #{decoder_block.11} parent=0
    #allocation2 [shape = 'u8[8192]{0}', space=vmem, size = 0x2000, scoped, tag = 'output window, operand 0, single buffered']
    #allocation3 [shape = 's32[1]{0}', space=sflag, size = 0x4, scoped, tag = 'scoped memory for decoder_block.11']
    %15 = vsyncpa [#allocation3], 0
    // Predicated region
    $region2: #{decoder_block.11} parent=1 // pred_check
      _
    $region3: #{decoder_block.11} parent=1 // pred_check_branch
      %17 = sbr.rel (0) target = $region5
    $region4: #{decoder_block.11} parent=1 // pred_region
      _
    $region5: #{decoder_block.11} parent=1 // pred_fallthru
      _
    // Predicated region
    $region6: #{decoder_block.11} parent=1 // pred_check
      _
    $region7: #{decoder_block.11} parent=1 // pred_check_branch
      %19 = sbr.rel (0) target = $region9
    $region8: #{decoder_block.11} parent=1 // pred_region
      _
    $region9: #{decoder_block.11} parent=1 // pred_fallthru
      _
    // Predicated region
    $region10: #{decoder_block.11} parent=1 // pred_check
      _
    $region11: #{decoder_block.11} parent=1 // pred_check_branch
      %21 = sbr.rel (0) target = $region13
    $region12: #{decoder_block.11} parent=1 // pred_region
      _
    $region13: #{decoder_block.11} parent=1 // pred_fallthru
      _
    // Predicated region
    $region14: #{decoder_block.11} parent=1 // pred_check
      _
    $region15: #{decoder_block.11} parent=1 // pred_check_branch
      %23 = sbr.rel (0) target = $region17
    $region16: #{decoder_block.11} parent=1 // pred_region
      _
    $region17: #{decoder_block.11} parent=1 // pred_fallthru
      _
    // Predicated region
    $region18: #{decoder_block.11} parent=1 // pred_check
      _
    $region19: #{decoder_block.11} parent=1 // pred_check_branch
      %25 = sbr.rel (0) target = $region21
    $region20: #{decoder_block.11} parent=1 // pred_region
      _
    $region21: #{decoder_block.11} parent=1 // pred_fallthru
      _
    // Predicated region
    $region22: #{decoder_block.11} parent=1 // pred_check
      _
    $region23: #{decoder_block.11} parent=1 // pred_check_branch
      %27 = sbr.rel (0) target = $region25
    $region24: #{decoder_block.11} parent=1 // pred_region
      _
    $region25: #{decoder_block.11} parent=1 // pred_fallthru
      _
    // Predicated region
    $region26: #{decoder_block.11} parent=1 // pred_check
      _
    $region27: #{decoder_block.11} parent=1 // pred_check_branch
      %29 = sbr.rel (0) target = $region29
    $region28: #{decoder_block.11} parent=1 // pred_region
      _
    $region29: #{decoder_block.11} parent=1 // pred_fallthru
      _
    // Predicated region
    $region30: #{decoder_block.11} parent=1 // pred_check
      _
    $region31: #{decoder_block.11} parent=1 // pred_check_branch
      %31 = sbr.rel (0) target = $region33
    $region32: #{decoder_block.11} parent=1 // pred_region
      _
    $region33: #{decoder_block.11} parent=1 // pred_fallthru
      _
    // Predicated region
    $region34: #{decoder_block.11} parent=1 // pred_check
      _
    $region35: #{decoder_block.11} parent=1 // pred_check_branch
      %33 = sbr.rel (0) target = $region37
    $region36: #{decoder_block.11} parent=1 // pred_region
      _
    $region37: #{decoder_block.11} parent=1 // pred_fallthru
      _
    // Predicated region
    $region38: #{decoder_block.11} parent=1 // pred_check
      _
    $region39: #{decoder_block.11} parent=1 // pred_check_branch
      %35 = sbr.rel (0) target = $region41
    $region40: #{decoder_block.11} parent=1 // pred_region
      _
    $region41: #{decoder_block.11} parent=1 // pred_fallthru
      _
    %v37 = vld [vmem:[%s0] sm:$0xff]
    %v38 = vld [vmem:[%s0 + $0x8] sm:$0xff]
    %v39 = vld [vmem:[%s1] sm:$0xff]
    %v40 = vld [vmem:[%s1 + $0x8] sm:$0xff]
    %v41 = vadd.f32 %v37, %v39
    %v42 = vadd.f32 %v38, %v40
    %vm43 = vcmask 261120
    %v44 = vsel %vm43, %v41, 0.0
    %45 = vadd.xlane.f32.xlu0 %v44
    %v46 = vpop.xlane.xlu0 %45
    %v47 = vsel %vm43, %v42, 0.0
    %48 = vadd.xlane.f32.xlu0 %v47
    %v49 = vpop.xlane.xlu0 %48
    %v50 = vrcp.pop 32.0
    %v51 = vmul.f32 %v46, %v50
    %v52 = vmul.f32 %v49, %v50
    %v53 = vsub.f32 %v41, %v51
    %v54 = vsub.f32 %v42, %v52
    %v55 = vmul.f32 %v53, %v53
    %v56 = vmul.f32 %v54, %v54
    %v57 = vsel %vm43, %v55, 0.0
    %58 = vadd.xlane.f32.xlu0 %v57
    %v59 = vpop.xlane.xlu0 %58
    %v60 = vsel %vm43, %v56, 0.0
    %61 = vadd.xlane.f32.xlu0 %v60
    %v62 = vpop.xlane.xlu0 %61
    %v63 = vmul.f32 %v59, %v50
    %v64 = vmul.f32 %v62, %v50
    %v65 = vadd.f32 %v63, 1e-05
    %v66 = vadd.f32 %v64, 1e-05
    %v67 = vrsqrt.pop %v65
    %v68 = vrsqrt.pop %v66
    %v69 = vmul.f32 %v53, %v67
    %v70 = vmul.f32 %v54, %v68
    %v71 = vld [vmem:[%s2] sm:$0x1]
    %v73 = vlaneseq
    %v74 = vshrl.u32 %v73, 7
    %v75 = vsub.s32 0, %v74
    %v76 = vrot.slane %v71, %v75
    %v78 = vmul.f32 %v69, %v76
    %v79 = vmul.f32 %v70, %v76
    %v80 = vld [vmem:[%s3] sm:$0x1]
    %v82 = vlaneseq
    %v83 = vshrl.u32 %v82, 7
    %v84 = vsub.s32 0, %v83
    %v85 = vrot.slane %v80, %v84
    %v87 = vadd.f32 %v78, %v85
    %v88 = vadd.f32 %v79, %v85
    %v89 = vpack.c.bf16 %v88, %v87
    %v90 = vld [vmem:[%s4] sm:$0xf]
    %v91 = vld [vmem:[%s4 + $0x4] sm:$0xf]
    %v92 = vld [vmem:[%s4 + $0x8] sm:$0xf]
    %v93 = vld [vmem:[%s4 + $0xc] sm:$0xf]
    %v94 = vld [vmem:[%s4 + $0x10] sm:$0xf]
    %v95 = vld [vmem:[%s4 + $0x14] sm:$0xf]
    %v96 = vld [vmem:[%s4 + $0x18] sm:$0xf]
    %v97 = vld [vmem:[%s4 + $0x1c] sm:$0xf]
    %v98 = vld [vmem:[%s5] sm:$0x1]
    %v100 = vlaneseq
    %v101 = vshrl.u32 %v100, 7
    %v102 = vsub.s32 0, %v101
    %v103 = vrot.slane %v98, %v102
    %v113 = vunpack.c.l.b16 %v90
    %v114 = vunpack.c.l.b16 %v91
    %v115 = vunpack.c.l.b16 %v92
    %v116 = vunpack.c.l.b16 %v93
    %v117 = vunpack.c.l.b16 %v94
    %v118 = vunpack.c.l.b16 %v95
    %v119 = vunpack.c.l.b16 %v96
    %v120 = vunpack.c.l.b16 %v97
    %v121 = vpack.c.b16 %v114, %v113
    %v122 = vpack.c.b16 %v116, %v115
    %v123 = vpack.c.b16 %v118, %v117
    %v124 = vpack.c.b16 %v120, %v119
    %v126 = vsel %vm43, %v89, 0
    %v129 = vsel %vm43, %v121, 0
    %v132 = vsel %vm43, %v122, 0
    %v135 = vsel %vm43, %v123, 0
    %v138 = vsel %vm43, %v124, 0
    %140 = vmatprep.subr.bf16.mxu0 0
    %141 = vmatpush1.bf16.xpose.msra.mxu0 %v129
    %142 = vmatprep.subr.bf16.mxu0 0
    %143 = vmatpush1.bf16.xpose.msra.mxu0 %v132
    %144 = vmatprep.subr.bf16.mxu0 0
    %145 = vmatpush1.bf16.xpose.msra.mxu0 %v135
    %146 = vmatprep.subr.bf16.mxu0 0
    %147 = vmatpush1.bf16.xpose.msra.mxu0 %v138
    %148 = vmatprep.subr.bf16.mxu0 0
    %149 = vmatpush1.bf16.xpose.msra.mxu0 0
    %150 = vmatprep.subr.bf16.mxu0 0
    %151 = vmatpush1.bf16.xpose.msra.mxu0 0
    %152 = vmatprep.subr.bf16.mxu0 0
    %153 = vmatpush1.bf16.xpose.msra.mxu0 0
    %154 = vmatprep.subr.bf16.mxu0 0
    %155 = vmatpush1.bf16.xpose.msra.mxu0 0
    %156 = vmatprep.subr.bf16.mxu0 0
    %157 = vmatpush1.bf16.xpose.msra.mxu0 0
    %158 = vmatprep.subr.bf16.mxu0 0
    %159 = vmatpush1.bf16.xpose.msra.mxu0 0
    %160 = vmatprep.subr.bf16.mxu0 0
    %161 = vmatpush1.bf16.xpose.msra.mxu0 0
    %162 = vmatprep.subr.bf16.mxu0 0
    %163 = vmatpush1.bf16.xpose.msra.mxu0 0
    %164 = vmatprep.subr.bf16.mxu0 0
    %165 = vmatpush1.bf16.xpose.msra.mxu0 0
    %166 = vmatprep.subr.bf16.mxu0 0
    %167 = vmatpush1.bf16.xpose.msra.mxu0 0
    %168 = vmatprep.subr.bf16.mxu0 0
    %169 = vmatpush1.bf16.xpose.msra.mxu0 0
    %170 = vmatprep.subr.bf16.mxu0 0
    %171 = vmatpush1.bf16.xpose.msra.mxu0 0
    %172 = vmatprep.mubr.bf16.mxu0 0
    %173 = vmatmul.mubr.bf16.gmra.mrb[0].mxu0 %v126
    %v174 = vpop.f32.mrb[0].mxu0
    %v175 = vadd.f32 %v103, %v174
    %v176 = vpop.f32.mrb[0].mxu0
    %v177 = vpop.f32.mrb[0].mxu0
    %v178 = vadd.f32 %v103, %v177
    %v179 = vpop.f32.mrb[0].mxu0
    %180 = vdwg.mxu0
    %v181 = vmul.f32 %v175, 0.5
    %v182 = vmul.f32 %v178, 0.5
    %v183 = vmul.f32 %v175, 0.70710677
    %v184 = vmul.f32 %v178, 0.70710677
    %v185 = vand.u32 2147483647, %v183
    %v186 = vand.u32 2147483647, %v184
    %v187 = vmul.f32 %v185, 0.3275911
    %v188 = vmul.f32 %v186, 0.3275911
    %v189 = vadd.f32 %v187, 1.0
    %v190 = vadd.f32 %v188, 1.0
    %v191 = vrcp.pop %v189
    %v192 = vmul.f32 1.0, %v191
    %v193 = vrcp.pop %v190
    %v194 = vmul.f32 1.0, %v193
    %v195 = vmul.f32 %v192, 1.0614054
    %v196 = vmul.f32 %v194, 1.0614054
    %v197 = vadd.f32 %v195, -1.4531521
    %v198 = vadd.f32 %v196, -1.4531521
    %v199 = vmul.f32 %v197, %v192
    %v200 = vmul.f32 %v198, %v194
    %v201 = vadd.f32 %v199, 1.4214138
    %v202 = vadd.f32 %v200, 1.4214138
    %v203 = vmul.f32 %v201, %v192
    %v204 = vmul.f32 %v202, %v194
    %v205 = vadd.f32 %v203, -0.28449672
    %v206 = vadd.f32 %v204, -0.28449672
    %v207 = vmul.f32 %v205, %v192
    %v208 = vmul.f32 %v206, %v194
    %v209 = vadd.f32 %v207, 0.2548296
    %v210 = vadd.f32 %v208, 0.2548296
    %v211 = vmul.f32 %v209, %v192
    %v212 = vmul.f32 %v210, %v194
    %v213 = vsub.f32 0.0, %v185
    %v214 = vsub.f32 0.0, %v186
    %v215 = vmul.f32 %v213, %v185
    %v216 = vmul.f32 %v214, %v186
    %v217 = vmul.f32 %v215, 1.442695
    %v218 = vpow.pop %v217
    %v219 = vmul.f32 %v216, 1.442695
    %v220 = vpow.pop %v219
    %v221 = vmul.f32 %v211, %v218
    %v222 = vmul.f32 %v212, %v220
    %v223 = vsub.f32 1.0, %v221
    %v224 = vsub.f32 1.0, %v222
    %vm225 = vcmp.lt.f32.partialorder %v183, 0.0
    %vm226 = vcmp.lt.f32.partialorder %v184, 0.0
    %v227 = vsub.f32 0.0, %v223
    %v228 = vsub.f32 0.0, %v224
    %v229 = vsel %vm225, %v227, %v223
    %v230 = vsel %vm226, %v228, %v224
    %v231 = vadd.f32 %v229, 1.0
    %v232 = vadd.f32 %v230, 1.0
    %v233 = vmul.f32 %v181, %v231
    %v234 = vmul.f32 %v182, %v232
    %v235 = vpack.c.bf16 %v234, %v233
    %v236 = vld [vmem:[%s6] sm:$0xf]
    %v237 = vld [vmem:[%s6 + $0x4] sm:$0xf]
    %v238 = vld [vmem:[%s6 + $0x8] sm:$0xf]
    %v239 = vld [vmem:[%s6 + $0xc] sm:$0xf]
    %v240 = vld [vmem:[%s7] sm:$0x1]
    %v242 = vlaneseq
    %v243 = vshrl.u32 %v242, 7
    %v244 = vsub.s32 0, %v243
    %v245 = vrot.slane %v240, %v244
    %v251 = vunpack.c.l.b16 %v236
    %v252 = vunpack.c.l.b16 %v237
    %v253 = vunpack.c.l.b16 %v238
    %v254 = vunpack.c.l.b16 %v239
    %v255 = vpack.c.b16 %v252, %v251
    %v256 = vpack.c.b16 %v254, %v253
    %vm257 = vcmask 523264
    %v259 = vsel %vm257, %v235, 0
    %v262 = vsel %vm257, %v255, 0
    %v265 = vsel %vm257, %v256, 0
    %267 = vmatprep.subr.bf16.mxu0 0
    %268 = vmatpush1.bf16.xpose.msra.mxu0 %v262
    %269 = vmatprep.subr.bf16.mxu0 0
    %270 = vmatpush1.bf16.xpose.msra.mxu0 %v265
    %271 = vmatprep.subr.bf16.mxu0 0
    %272 = vmatpush1.bf16.xpose.msra.mxu0 0
    %273 = vmatprep.subr.bf16.mxu0 0
    %274 = vmatpush1.bf16.xpose.msra.mxu0 0
    %275 = vmatprep.subr.bf16.mxu0 0
    %276 = vmatpush1.bf16.xpose.msra.mxu0 0
    %277 = vmatprep.subr.bf16.mxu0 0
    %278 = vmatpush1.bf16.xpose.msra.mxu0 0
    %279 = vmatprep.subr.bf16.mxu0 0
    %280 = vmatpush1.bf16.xpose.msra.mxu0 0
    %281 = vmatprep.subr.bf16.mxu0 0
    %282 = vmatpush1.bf16.xpose.msra.mxu0 0
    %283 = vmatprep.subr.bf16.mxu0 0
    %284 = vmatpush1.bf16.xpose.msra.mxu0 0
    %285 = vmatprep.subr.bf16.mxu0 0
    %286 = vmatpush1.bf16.xpose.msra.mxu0 0
    %287 = vmatprep.subr.bf16.mxu0 0
    %288 = vmatpush1.bf16.xpose.msra.mxu0 0
    %289 = vmatprep.subr.bf16.mxu0 0
    %290 = vmatpush1.bf16.xpose.msra.mxu0 0
    %291 = vmatprep.subr.bf16.mxu0 0
    %292 = vmatpush1.bf16.xpose.msra.mxu0 0
    %293 = vmatprep.subr.bf16.mxu0 0
    %294 = vmatpush1.bf16.xpose.msra.mxu0 0
    %295 = vmatprep.subr.bf16.mxu0 0
    %296 = vmatpush1.bf16.xpose.msra.mxu0 0
    %297 = vmatprep.subr.bf16.mxu0 0
    %298 = vmatpush1.bf16.xpose.msra.mxu0 0
    %299 = vmatprep.mubr.bf16.mxu0 0
    %300 = vmatmul.mubr.bf16.gmra.mrb[0].mxu0 %v259
    %v301 = vpop.f32.mrb[0].mxu0
    %v302 = vadd.f32 %v245, %v301
    %v303 = vpop.f32.mrb[0].mxu0
    %v304 = vpop.f32.mrb[0].mxu0
    %v305 = vadd.f32 %v245, %v304
    %v306 = vpop.f32.mrb[0].mxu0
    %307 = vdwg.mxu0
    %v308 = vadd.f32 %v302, %v87
    %v309 = vadd.f32 %v305, %v88
    %v310 = vsel %vm43, %v308, 0.0
    %311 = vadd.xlane.f32.xlu0 %v310
    %v312 = vpop.xlane.xlu0 %311
    %v313 = vsel %vm43, %v309, 0.0
    %314 = vadd.xlane.f32.xlu0 %v313
    %v315 = vpop.xlane.xlu0 %314
    %v316 = vmul.f32 %v312, %v50
    %v317 = vmul.f32 %v315, %v50
    %v318 = vsub.f32 %v308, %v316
    %v319 = vsub.f32 %v309, %v317
    %v320 = vmul.f32 %v318, %v318
    %v321 = vmul.f32 %v319, %v319
    %v322 = vsel %vm43, %v320, 0.0
    %323 = vadd.xlane.f32.xlu0 %v322
    %v324 = vpop.xlane.xlu0 %323
    %v325 = vsel %vm43, %v321, 0.0
    %326 = vadd.xlane.f32.xlu0 %v325
    %v327 = vpop.xlane.xlu0 %326
    %v328 = vmul.f32 %v324, %v50
    %v329 = vmul.f32 %v327, %v50
    %v330 = vadd.f32 %v328, 1e-05
    %v331 = vadd.f32 %v329, 1e-05
    %v332 = vrsqrt.pop %v330
    %v333 = vrsqrt.pop %v331
    %v334 = vmul.f32 %v318, %v332
    %v335 = vmul.f32 %v319, %v333
    %v336 = vld [vmem:[%s8] sm:$0x1]
    %v338 = vlaneseq
    %v339 = vshrl.u32 %v338, 7
    %v340 = vsub.s32 0, %v339
    %v341 = vrot.slane %v336, %v340
    %v343 = vmul.f32 %v334, %v341
    %v344 = vmul.f32 %v335, %v341
    %v345 = vld [vmem:[%s9] sm:$0x1]
    %v347 = vlaneseq
    %v348 = vshrl.u32 %v347, 7
    %v349 = vsub.s32 0, %v348
    %v350 = vrot.slane %v345, %v349
    %v352 = vadd.f32 %v343, %v350
    %v353 = vadd.f32 %v344, %v350
    %354 = vst.msk [vmem:[#allocation2] sm:$0xff] %vm43, %v352
    %355 = vst.msk [vmem:[#allocation2 + $0x8] sm:$0xff] %vm43, %v353
    // Predicated region
    $region42: #{decoder_block.11} parent=1 // pred_check
      _
    $region43: #{decoder_block.11} parent=1 // pred_check_branch
      %357 = sbr.rel (0) target = $region45
    $region44: #{decoder_block.11} parent=1 // pred_region
      %s359 = ssub.s32 256, 256
      %360 = vsyncadd [#allocation3], %s359
      %s361 = sshll.u32 [#allocation2], 4
      %s362 = int_to_ptr.vmem [resolvable:$true] %s361
      %367 = dma.vmem_to_hbm [thread:$0]  %s362, 256, %s10, [#allocation3], 128, 128, 8
    $region45: #{decoder_block.11} parent=1 // pred_fallthru
      _
    // Predicated region
    $region46: #{decoder_block.11} parent=1 // pred_check
      _
    $region47: #{decoder_block.11} parent=1 // pred_check_branch
      %369 = sbr.rel (0) target = $region49
    $region48: #{decoder_block.11} parent=1 // pred_region
      %370 = dma.done [#allocation3], 256
    $region49: #{decoder_block.11} parent=1 // pred_fallthru
      _
    %371 = vsyncpa [#allocation3], 1

</llo_original>
